<compile_context>
chip_gen: v7x
topology: tpu7x:2x2x1
jax: 0.10.0
libtpu: 0.0.40
codegen_flags: <defaults>
</compile_context>

<pallas_src>
import functools

import jax
import jax.numpy as jnp
import numpy as np
from jax.experimental import pallas as pl
from jax.experimental.pallas import tpu as pltpu


def _round_up(x, m):
    return (x + m - 1) // m * m


def _pick_batch_tile(n):
    # Fold several images into one grid step to amortize per-step pipeline
    # overhead, but keep the grid length >= 2 when possible so
    # dimension_semantics=("parallel",) still uses both TensorCores on v7x.
    if n <= 2:
        return 1
    for b in range(n // 2, 0, -1):
        if n % b == 0:
            return b
    return 1


def _silu(v):
    # SiLU(v) = v * sigmoid(v) = v / (1 + exp(-v)).
    # exp -> EUP; approx reciprocal (vrcp, EUP) + one Newton-Raphson step
    # gives ~1e-7 relative error, well inside the 1e-5 accuracy target.
    d = 1.0 + jnp.exp(-v)
    r = pl.reciprocal(d, approx=True)
    r = r * (2.0 - d * r)          # Newton refinement
    return v * r


# ----------------------------------------------------------------------------
# Pallas kernel: fused conv1(3x3) + SiLU + conv2(1x1) + SiLU
# One grid step processes `batch_tile` images packed along the lane axis.
# ----------------------------------------------------------------------------
def _fused_conv_silu_kernel(x_ref, w1_ref, b1_ref, w2_ref, b2_ref, out_ref,
                            *, tap_offsets, batch_tile, sp_in, sp_out):
    # x_ref  : (Cin_pad, B*sp_in)      channel-major images, flattened + padded
    # w1_ref : (C1, KH*KW*Cin_pad)     conv1 weights, tap-major stacked
    # b1_ref : (C1, 1)
    # w2_ref : (C2, C1)                1x1 conv weights
    # b2_ref : (C2, 1)
    # out_ref: (C2, B*sp_out)          channel-major outputs (cropped in wrapper)
    x = x_ref[...]                                       # f32 already

    # Stacked tap matrix (KH*KW*Cin_pad, B*sp_out): one lane-shifted static
    # slice per tap per image strip -> conv1 becomes a single K-deep MXU dot.
    rows = []
    for off in tap_offsets:                              # static Python loop
        per_img = [x[:, b * sp_in + off: b * sp_in + off + sp_out]
                   for b in range(batch_tile)]
        rows.append(per_img[0] if batch_tile == 1
                    else jnp.concatenate(per_img, axis=1))
    taps = jnp.concatenate(rows, axis=0)

    h = jnp.dot(w1_ref[...], taps,
                preferred_element_type=jnp.float32,
                precision=jax.lax.Precision.HIGHEST)     # (C1, B*sp_out)
    h = _silu(h + b1_ref[...])

    y = jnp.dot(w2_ref[...], h,
                preferred_element_type=jnp.float32,
                precision=jax.lax.Precision.HIGHEST)     # (C2, B*sp_out)
    y = _silu(y + b2_ref[...])

    out_ref[...] = y.astype(out_ref.dtype)               # lane-dense full vst


# ----------------------------------------------------------------------------
# Wrapper: NCHW input, PyTorch-layout weights -> NCHW output
# ----------------------------------------------------------------------------
@functools.partial(jax.jit, static_argnames=("batch_tile",))
def test_model_forward(x_nchw, w1, b1, w2, b2, batch_tile=None):
    # x_nchw: (N, 3, H, W)
    # w1: (8, 3, 3, 3)   b1: (8,)     [PyTorch OIHW]
    # w2: (16, 8, 1, 1)  b2: (16,)
    N, Cin, H, W = x_nchw.shape
    C1, _, KH, KW = w1.shape
    C2 = w2.shape[0]
    OH, OW = H - KH + 1, W - KW + 1

    if batch_tile is None:
        batch_tile = _pick_batch_tile(N)
    if N % batch_tile != 0:
        raise ValueError("batch_tile must divide the batch size")
    G = N // batch_tile

    sp_out = _round_up(H * W, 128)          # lane-dense per-image output width
    max_off = (KH - 1) * W + (KW - 1)
    sp_in = _round_up(sp_out + max_off, 128)  # per-image input strip width
    cin_pad = _round_up(Cin, 8)             # sublane-aligned tap pieces (f32)

    # NCHW -> (N, Cin, H*W) is a view; pad channels to a sublane multiple and
    # the flattened spatial axis so every in-kernel tap slice stays in bounds
    # (pad >= max_off also prevents any cross-image bleed when batch folding).
    x_flat = jnp.pad(x_nchw.reshape(N, Cin, H * W).astype(jnp.float32),
                     ((0, 0), (0, cin_pad - Cin), (0, sp_in - H * W)))
    # Fold batch_tile images into the lane axis of one grid step.
    x_slab = (x_flat.reshape(G, batch_tile, cin_pad, sp_in)
              .transpose(0, 2, 1, 3)
              .reshape(G, cin_pad, batch_tile * sp_in))

    # conv1 weights: (C1, Cin, KH, KW) -> (C1, KH*KW*cin_pad), tap-major,
    # matching the tap/channel order of the in-kernel stacked tap matrix.
    w1f = jnp.transpose(w1.astype(jnp.float32), (0, 2, 3, 1))      # (C1,KH,KW,Cin)
    w1f = jnp.pad(w1f, ((0, 0), (0, 0), (0, 0), (0, cin_pad - Cin)))
    w1f = w1f.reshape(C1, KH * KW * cin_pad)
    b1c = b1.astype(jnp.float32).reshape(C1, 1)
    w2m = w2.astype(jnp.float32).reshape(C2, C1)
    b2c = b2.astype(jnp.float32).reshape(C2, 1)

    tap_offsets = tuple(kh * W + kw for kh in range(KH) for kw in range(KW))
    kernel = functools.partial(_fused_conv_silu_kernel,
                               tap_offsets=tap_offsets,
                               batch_tile=batch_tile,
                               sp_in=sp_in, sp_out=sp_out)

    flops = N * sp_out * (2 * KH * KW * cin_pad * C1 + 2 * C1 * C2
                          + 6 * (C1 + C2))
    transcendentals = N * sp_out * (C1 + C2)
    bytes_accessed = 4 * (N * cin_pad * sp_in + N * C2 * sp_out
                          + C1 * KH * KW * cin_pad + C1 + C2 * C1 + C2)

    out_slab = pl.pallas_call(
        kernel,
        out_shape=jax.ShapeDtypeStruct((G, C2, batch_tile * sp_out),
                                       jnp.float32),
        grid=(G,),
        in_specs=[
            pl.BlockSpec((None, cin_pad, batch_tile * sp_in),
                         lambda n: (n, 0, 0)),                 # image slab / step
            pl.BlockSpec((C1, KH * KW * cin_pad), lambda n: (0, 0)),  # weights resident
            pl.BlockSpec((C1, 1), lambda n: (0, 0)),
            pl.BlockSpec((C2, C1), lambda n: (0, 0)),
            pl.BlockSpec((C2, 1), lambda n: (0, 0)),
        ],
        out_specs=pl.BlockSpec((None, C2, batch_tile * sp_out),
                               lambda n: (n, 0, 0)),
        compiler_params=pltpu.CompilerParams(
            dimension_semantics=("parallel",)),                # shard steps across TCs
        cost_estimate=pl.CostEstimate(flops=flops,
                                      transcendentals=transcendentals,
                                      bytes_accessed=bytes_accessed),
    )(x_slab, w1f, b1c, w2m, b2c)

    # Un-fold the batch tile, crop the spatial padding, and crop to the VALID
    # conv output.  Channel-major output is already NCHW (no C<->HW transpose).
    out = (out_slab.reshape(G, C2, batch_tile, sp_out)
           .transpose(0, 2, 1, 3)
           .reshape(N, C2, sp_out)[:, :, :H * W]
           .reshape(N, C2, H, W)[:, :, :OH, :OW])
    return out


# ----------------------------------------------------------------------------
# Pure-JAX reference (for correctness check)
# ----------------------------------------------------------------------------
def _reference(x_nchw, w1, b1, w2, b2):
    dn = ("NCHW", "OIHW", "NCHW")
    y = jax.lax.conv_general_dilated(x_nchw, w1, (1, 1), "VALID",
                                     dimension_numbers=dn,
                                     precision=jax.lax.Precision.HIGHEST)
    y = y + b1[None, :, None, None]
    y = y * jax.nn.sigmoid(y)
    y = jax.lax.conv_general_dilated(y, w2, (1, 1), "VALID",
                                     dimension_numbers=dn,
                                     precision=jax.lax.Precision.HIGHEST)
    y = y + b2[None, :, None, None]
    y = y * jax.nn.sigmoid(y)
    return y


if __name__ == "__main__":
    key = jax.random.PRNGKey(0)
    k_x, k_w1, k_b1, k_w2, k_b2 = jax.random.split(key, 5)

    # Small shapes consistent with the module: batch=2, 3 input channels, 16x16.
    x = jax.random.normal(k_x, (2, 3, 16, 16), dtype=jnp.float32)

    # Deterministic synthetic parameters (PyTorch layouts).
    w1 = 0.1 * jax.random.normal(k_w1, (8, 3, 3, 3), dtype=jnp.float32)
    b1 = 0.1 * jax.random.normal(k_b1, (8,), dtype=jnp.float32)
    w2 = 0.1 * jax.random.normal(k_w2, (16, 8, 1, 1), dtype=jnp.float32)
    b2 = 0.1 * jax.random.normal(k_b2, (16,), dtype=jnp.float32)

    ref = jax.block_until_ready(_reference(x, w1, b1, w2, b2))

    # Default: one image per step (grid=(2,)) -> both TensorCores usable on v7x.
    out = jax.block_until_ready(test_model_forward(x, w1, b1, w2, b2))
    assert out.shape == (2, 16, 14, 14), out.shape
    np.testing.assert_allclose(np.asarray(out), np.asarray(ref),
                               atol=1e-5, rtol=1e-5)

    # Batch-folded variant: both images in one grid step (grid=(1,)) — the
    # minimum-step-overhead choice on single-TensorCore chips (v5e/v6e).
    out2 = jax.block_until_ready(
        test_model_forward(x, w1, b1, w2, b2, batch_tile=2))
    np.testing.assert_allclose(np.asarray(out2), np.asarray(ref),
                               atol=1e-5, rtol=1e-5)

    print("KERNEL_OK")
</pallas_src>

<mosaic_0001>
module attributes {stable_mosaic.version = 11 : i64} {
  func.func @_fused_conv_silu_kernel(%arg0: i32, %arg1: memref<1x8x384xf32, #tpu.memory_space<vmem>>, %arg2: memref<8x72xf32, #tpu.memory_space<vmem>>, %arg3: memref<8x1xf32, #tpu.memory_space<vmem>>, %arg4: memref<16x8xf32, #tpu.memory_space<vmem>>, %arg5: memref<16x1xf32, #tpu.memory_space<vmem>>, %arg6: memref<1x16x256xf32, #tpu.memory_space<vmem>>) attributes {dimension_semantics = [#tpu.dimension_semantics<parallel>], iteration_bounds = array<i64: 2>, scalar_prefetch = 0 : i64, scratch_operands = 0 : i64, tpu.core_type = #tpu.core_type<tc>, window_params = [{transform_indices = @transform_0, window_bounds = array<i64: 1, 8, 384>}, {pipeline_mode = #tpu.pipeline_mode<synchronous>, transform_indices = @transform_1, window_bounds = array<i64: 8, 72>}, {pipeline_mode = #tpu.pipeline_mode<synchronous>, transform_indices = @transform_2, window_bounds = array<i64: 8, 1>}, {pipeline_mode = #tpu.pipeline_mode<synchronous>, transform_indices = @transform_3, window_bounds = array<i64: 16, 8>}, {pipeline_mode = #tpu.pipeline_mode<synchronous>, transform_indices = @transform_4, window_bounds = array<i64: 16, 1>}, {transform_indices = @transform_5, window_bounds = array<i64: 1, 16, 256>}]} {
    %c0 = arith.constant 0 : index
    %c0_0 = arith.constant 0 : index
    %c0_1 = arith.constant 0 : index
    %0 = vector.load %arg1[%c0, %c0_0, %c0_1] : memref<1x8x384xf32, #tpu.memory_space<vmem>>, vector<1x8x384xf32>
    %1 = vector.shape_cast %0 : vector<1x8x384xf32> to vector<8x384xf32>
    %2 = vector.extract_strided_slice %1 {offsets = [0, 0], sizes = [8, 256], strides = [1, 1]} : vector<8x384xf32> to vector<8x256xf32>
    %3 = vector.extract_strided_slice %1 {offsets = [0, 1], sizes = [8, 256], strides = [1, 1]} : vector<8x384xf32> to vector<8x256xf32>
    %4 = vector.extract_strided_slice %1 {offsets = [0, 2], sizes = [8, 256], strides = [1, 1]} : vector<8x384xf32> to vector<8x256xf32>
    %5 = vector.extract_strided_slice %1 {offsets = [0, 16], sizes = [8, 256], strides = [1, 1]} : vector<8x384xf32> to vector<8x256xf32>
    %6 = vector.extract_strided_slice %1 {offsets = [0, 17], sizes = [8, 256], strides = [1, 1]} : vector<8x384xf32> to vector<8x256xf32>
    %7 = vector.extract_strided_slice %1 {offsets = [0, 18], sizes = [8, 256], strides = [1, 1]} : vector<8x384xf32> to vector<8x256xf32>
    %8 = vector.extract_strided_slice %1 {offsets = [0, 32], sizes = [8, 256], strides = [1, 1]} : vector<8x384xf32> to vector<8x256xf32>
    %9 = vector.extract_strided_slice %1 {offsets = [0, 33], sizes = [8, 256], strides = [1, 1]} : vector<8x384xf32> to vector<8x256xf32>
    %10 = vector.extract_strided_slice %1 {offsets = [0, 34], sizes = [8, 256], strides = [1, 1]} : vector<8x384xf32> to vector<8x256xf32>
    %11 = tpu.concatenate %2, %3, %4, %5, %6, %7, %8, %9, %10 in 0 : vector<8x256xf32>, vector<8x256xf32>, vector<8x256xf32>, vector<8x256xf32>, vector<8x256xf32>, vector<8x256xf32>, vector<8x256xf32>, vector<8x256xf32>, vector<8x256xf32> -> vector<72x256xf32>
    %c0_2 = arith.constant 0 : index
    %c0_3 = arith.constant 0 : index
    %12 = vector.load %arg2[%c0_2, %c0_3] : memref<8x72xf32, #tpu.memory_space<vmem>>, vector<8x72xf32>
    %cst = arith.constant dense<0.000000e+00> : vector<8x256xf32>
    %13 = tpu.matmul %12, %11, %cst {dimension_numbers = #tpu.dot_dimension_numbers<[1], [0], [0], [1], [0, 0, 1, 1], [], []>, precision = #tpu.contract_precision<fp32>} : vector<8x72xf32>, vector<72x256xf32>, vector<8x256xf32> -> vector<8x256xf32>
    %c0_4 = arith.constant 0 : index
    %c0_5 = arith.constant 0 : index
    %14 = vector.load %arg3[%c0_4, %c0_5] : memref<8x1xf32, #tpu.memory_space<vmem>>, vector<8x1xf32>
    %15 = vector.broadcast %14 : vector<8x1xf32> to vector<8x256xf32>
    %16 = arith.addf %13, %15 : vector<8x256xf32>
    %cst_6 = arith.constant 0.000000e+00 : f32
    %17 = vector.broadcast %cst_6 : f32 to vector<8x256xf32>
    %18 = arith.subf %17, %16 : vector<8x256xf32>
    %19 = math.exp %18 : vector<8x256xf32>
    %cst_7 = arith.constant 1.000000e+00 : f32
    %20 = vector.broadcast %cst_7 : f32 to vector<8x256xf32>
    %21 = arith.addf %20, %19 : vector<8x256xf32>
    %22 = tpu.reciprocal %21 {approx = true} : vector<8x256xf32> -> vector<8x256xf32>
    %23 = arith.mulf %21, %22 : vector<8x256xf32>
    %cst_8 = arith.constant 2.000000e+00 : f32
    %24 = vector.broadcast %cst_8 : f32 to vector<8x256xf32>
    %25 = arith.subf %24, %23 : vector<8x256xf32>
    %26 = arith.mulf %22, %25 : vector<8x256xf32>
    %27 = arith.mulf %16, %26 : vector<8x256xf32>
    %c0_9 = arith.constant 0 : index
    %c0_10 = arith.constant 0 : index
    %28 = vector.load %arg4[%c0_9, %c0_10] : memref<16x8xf32, #tpu.memory_space<vmem>>, vector<16x8xf32>
    %cst_11 = arith.constant dense<0.000000e+00> : vector<16x256xf32>
    %29 = tpu.matmul %28, %27, %cst_11 {dimension_numbers = #tpu.dot_dimension_numbers<[1], [0], [0], [1], [0, 0, 1, 1], [], []>, precision = #tpu.contract_precision<fp32>} : vector<16x8xf32>, vector<8x256xf32>, vector<16x256xf32> -> vector<16x256xf32>
    %c0_12 = arith.constant 0 : index
    %c0_13 = arith.constant 0 : index
    %30 = vector.load %arg5[%c0_12, %c0_13] : memref<16x1xf32, #tpu.memory_space<vmem>>, vector<16x1xf32>
    %31 = vector.broadcast %30 : vector<16x1xf32> to vector<16x256xf32>
    %32 = arith.addf %29, %31 : vector<16x256xf32>
    %cst_14 = arith.constant 0.000000e+00 : f32
    %33 = vector.broadcast %cst_14 : f32 to vector<16x256xf32>
    %34 = arith.subf %33, %32 : vector<16x256xf32>
    %35 = math.exp %34 : vector<16x256xf32>
    %cst_15 = arith.constant 1.000000e+00 : f32
    %36 = vector.broadcast %cst_15 : f32 to vector<16x256xf32>
    %37 = arith.addf %36, %35 : vector<16x256xf32>
    %38 = tpu.reciprocal %37 {approx = true} : vector<16x256xf32> -> vector<16x256xf32>
    %39 = arith.mulf %37, %38 : vector<16x256xf32>
    %cst_16 = arith.constant 2.000000e+00 : f32
    %40 = vector.broadcast %cst_16 : f32 to vector<16x256xf32>
    %41 = arith.subf %40, %39 : vector<16x256xf32>
    %42 = arith.mulf %38, %41 : vector<16x256xf32>
    %43 = arith.mulf %32, %42 : vector<16x256xf32>
    %c0_17 = arith.constant 0 : index
    %c0_18 = arith.constant 0 : index
    %c0_19 = arith.constant 0 : index
    %44 = vector.load %arg6[%c0_17, %c0_18, %c0_19] : memref<1x16x256xf32, #tpu.memory_space<vmem>>, vector<1x16x256xf32>
    %45 = vector.shape_cast %44 : vector<1x16x256xf32> to vector<16x256xf32>
    %46 = vector.shape_cast %43 : vector<16x256xf32> to vector<1x16x256xf32>
    tpu.vector_store %arg6[%c0_17, %c0_18, %c0_19], %46 {strides = array<i32>} : memref<1x16x256xf32, #tpu.memory_space<vmem>>, vector<1x16x256xf32>,
    return
  }
  func.func @transform_0(%arg0: i32) -> (i32, i32, i32) {
    %c0_i32 = arith.constant 0 : i32
    %c0_i32_0 = arith.constant 0 : i32
    %c0_i32_1 = arith.constant 0 : i32
    return %arg0, %c0_i32, %c0_i32_0 : i32, i32, i32
  }
  func.func @transform_1(%arg0: i32) -> (i32, i32) {
    %c0_i32 = arith.constant 0 : i32
    %c0_i32_0 = arith.constant 0 : i32
    %c0_i32_1 = arith.constant 0 : i32
    return %c0_i32, %c0_i32_0 : i32, i32
  }
  func.func @transform_2(%arg0: i32) -> (i32, i32) {
    %c0_i32 = arith.constant 0 : i32
    %c0_i32_0 = arith.constant 0 : i32
    %c0_i32_1 = arith.constant 0 : i32
    return %c0_i32, %c0_i32_0 : i32, i32
  }
  func.func @transform_3(%arg0: i32) -> (i32, i32) {
    %c0_i32 = arith.constant 0 : i32
    %c0_i32_0 = arith.constant 0 : i32
    %c0_i32_1 = arith.constant 0 : i32
    return %c0_i32, %c0_i32_0 : i32, i32
  }
  func.func @transform_4(%arg0: i32) -> (i32, i32) {
    %c0_i32 = arith.constant 0 : i32
    %c0_i32_0 = arith.constant 0 : i32
    %c0_i32_1 = arith.constant 0 : i32
    return %c0_i32, %c0_i32_0 : i32, i32
  }
  func.func @transform_5(%arg0: i32) -> (i32, i32, i32) {
    %c0_i32 = arith.constant 0 : i32
    %c0_i32_0 = arith.constant 0 : i32
    %c0_i32_1 = arith.constant 0 : i32
    return %arg0, %c0_i32, %c0_i32_0 : i32, i32, i32
  }
}

</mosaic_0001>

<llo_original>
// kernel: test_model_forward.1
$region0: #{test_model_forward.1}
  #allocation0 [shape = 'u32[]', space=smem, size = 0x4, offset = 0x4, fixed_abs, tag = 'smem constant byte address 0x4 - core index']
  #allocation1 [shape = 'u32[144,128]{1,0:T(1,128)}', space=vmem, size = 0x12000, scoped, tag = 'internal scratch']
  %s0 = inlined_call_operand.vmem [shape: f32[2,8,384], index: 0, kind: input, shape index: {}]
  %s1 = inlined_call_operand.vmem [shape: f32[8,72], index: 1, kind: input, shape index: {}]
  %s2 = inlined_call_operand.vmem [shape: f32[8,1], index: 2, kind: input, shape index: {}]
  %s3 = inlined_call_operand.vmem [shape: f32[16,8], index: 3, kind: input, shape index: {}]
  %s4 = inlined_call_operand.vmem [shape: f32[16,1], index: 4, kind: input, shape index: {}]
  %s5 = inlined_call_operand.vmem [shape: f32[2,16,256], index: 5, kind: output, shape index: {}]
  %s6 = sld [smem:[#allocation0]]
  $region53: #{test_model_forward.1} parent=0
    _
  %s8 = ssub.s32 1, %s6
  %s9 = scalar_select 0, %s8, %s6
  loop: start=0, step=1, limit=4
  $region2: #{test_model_forward.1} parent=0 // loop_pre_header
    _
  $region3: #{test_model_forward.1} parent=0 // loop_header
    %s11 = sphi 0, %s15
    %p12 = scmp.ge.s32.totalorder %s11, 4
    %s21 = sphi 0, %s23
    %s24 = sphi 0, %s21
    %s25 = sphi 0, %s24
    %s41 = sphi 0, %s25
    %s45 = sphi 0, %s45
    %s47 = sphi 0, %s45
    %s48 = sphi 0, %s47
    %s62 = sphi 0, %s48
    %s66 = sphi 0, %s66
    %s68 = sphi 0, %s66
    %s69 = sphi 0, %s68
    %s83 = sphi 0, %s69
    %s87 = sphi 0, %s87
    %s89 = sphi 0, %s87
    %s90 = sphi 0, %s89
    %s104 = sphi 0, %s90
    %s108 = sphi 0, %s108
    %s110 = sphi 0, %s108
    %s111 = sphi 0, %s110
    %s125 = sphi 0, %s111
    %s131 = sphi 0, %s133
    %s134 = sphi 0, %s131
    %s135 = sphi 0, %s134
    %s151 = sphi 0, %s135
  $region4: #{test_model_forward.1} parent=0 // loop_header_branch
    %14 = sbr.rel (%p12) target = $region8
  $region5: #{test_model_forward.1} parent=0 // loop_body
    %s16 = ssub.s32 %s11, 1
    %s17 = ssub.s32 %s11, 2
    %s18 = sadd.s32 %s11, 1
    %s19 = ssub.s32 %s11, %s18
    %p20 = scmp.eq.s32.totalorder %s19, 0
    %s22 = sadd.s32 %s21, 1
    %s23 = scalar_select %p20, %s21, %s22
    %p26 = pneg %p20
    %p27 = scmp.eq.s32.totalorder %s11, 1
    %p28 = por %p26, %p27
    %p29 = scmp.ne.s32.totalorder %s21, %s24
    %p30 = scmp.eq.s32.totalorder %s11, 0
    %p31 = por %p29, %p30
    %p32 = scmp.ne.s32.totalorder %s21, %s24
    %p33 = scmp.eq.s32.totalorder %s16, 1
    %p34 = por %p32, %p33
    %p35 = scmp.ne.s32.totalorder %s24, %s25
    %p36 = scmp.eq.s32.totalorder %s16, 0
    %p37 = por %p35, %p36
    %p38 = scmp.ne.s32.totalorder %s24, %s25
    %p39 = scmp.eq.s32.totalorder %s17, 1
    %p40 = por %p38, %p39
    %p42 = scmp.ne.s32.totalorder %s25, %s41
    %p43 = scmp.eq.s32.totalorder %s17, 0
    %p44 = por %p42, %p43
    %s46 = sadd.s32 %s45, 1
    %p49 = scmp.eq.s32.totalorder %s11, 1
    %p50 = scmp.ne.s32.totalorder %s45, %s47
    %p51 = scmp.eq.s32.totalorder %s11, 0
    %p52 = por %p50, %p51
    %p53 = scmp.ne.s32.totalorder %s45, %s47
    %p54 = scmp.eq.s32.totalorder %s16, 1
    %p55 = por %p53, %p54
    %p56 = scmp.ne.s32.totalorder %s47, %s48
    %p57 = scmp.eq.s32.totalorder %s16, 0
    %p58 = por %p56, %p57
    %p59 = scmp.ne.s32.totalorder %s47, %s48
    %p60 = scmp.eq.s32.totalorder %s17, 1
    %p61 = por %p59, %p60
    %p63 = scmp.ne.s32.totalorder %s48, %s62
    %p64 = scmp.eq.s32.totalorder %s17, 0
    %p65 = por %p63, %p64
    %s67 = sadd.s32 %s66, 1
    %p70 = scmp.eq.s32.totalorder %s11, 1
    %p71 = scmp.ne.s32.totalorder %s66, %s68
    %p72 = scmp.eq.s32.totalorder %s11, 0
    %p73 = por %p71, %p72
    %p74 = scmp.ne.s32.totalorder %s66, %s68
    %p75 = scmp.eq.s32.totalorder %s16, 1
    %p76 = por %p74, %p75
    %p77 = scmp.ne.s32.totalorder %s68, %s69
    %p78 = scmp.eq.s32.totalorder %s16, 0
    %p79 = por %p77, %p78
    %p80 = scmp.ne.s32.totalorder %s68, %s69
    %p81 = scmp.eq.s32.totalorder %s17, 1
    %p82 = por %p80, %p81
    %p84 = scmp.ne.s32.totalorder %s69, %s83
    %p85 = scmp.eq.s32.totalorder %s17, 0
    %p86 = por %p84, %p85
    %s88 = sadd.s32 %s87, 1
    %p91 = scmp.eq.s32.totalorder %s11, 1
    %p92 = scmp.ne.s32.totalorder %s87, %s89
    %p93 = scmp.eq.s32.totalorder %s11, 0
    %p94 = por %p92, %p93
    %p95 = scmp.ne.s32.totalorder %s87, %s89
    %p96 = scmp.eq.s32.totalorder %s16, 1
    %p97 = por %p95, %p96
    %p98 = scmp.ne.s32.totalorder %s89, %s90
    %p99 = scmp.eq.s32.totalorder %s16, 0
    %p100 = por %p98, %p99
    %p101 = scmp.ne.s32.totalorder %s89, %s90
    %p102 = scmp.eq.s32.totalorder %s17, 1
    %p103 = por %p101, %p102
    %p105 = scmp.ne.s32.totalorder %s90, %s104
    %p106 = scmp.eq.s32.totalorder %s17, 0
    %p107 = por %p105, %p106
    %s109 = sadd.s32 %s108, 1
    %p112 = scmp.eq.s32.totalorder %s11, 1
    %p113 = scmp.ne.s32.totalorder %s108, %s110
    %p114 = scmp.eq.s32.totalorder %s11, 0
    %p115 = por %p113, %p114
    %p116 = scmp.ne.s32.totalorder %s108, %s110
    %p117 = scmp.eq.s32.totalorder %s16, 1
    %p118 = por %p116, %p117
    %p119 = scmp.ne.s32.totalorder %s110, %s111
    %p120 = scmp.eq.s32.totalorder %s16, 0
    %p121 = por %p119, %p120
    %p122 = scmp.ne.s32.totalorder %s110, %s111
    %p123 = scmp.eq.s32.totalorder %s17, 1
    %p124 = por %p122, %p123
    %p126 = scmp.ne.s32.totalorder %s111, %s125
    %p127 = scmp.eq.s32.totalorder %s17, 0
    %p128 = por %p126, %p127
    %s129 = ssub.s32 %s11, %s18
    %p130 = scmp.eq.s32.totalorder %s129, 0
    %s132 = sadd.s32 %s131, 1
    %s133 = scalar_select %p130, %s131, %s132
    %p136 = pneg %p130
    %p137 = scmp.eq.s32.totalorder %s11, 1
    %p138 = por %p136, %p137
    %p139 = scmp.ne.s32.totalorder %s131, %s134
    %p140 = scmp.eq.s32.totalorder %s11, 0
    %p141 = por %p139, %p140
    %p142 = scmp.ne.s32.totalorder %s131, %s134
    %p143 = scmp.eq.s32.totalorder %s16, 1
    %p144 = por %p142, %p143
    %p145 = scmp.ne.s32.totalorder %s134, %s135
    %p146 = scmp.eq.s32.totalorder %s16, 0
    %p147 = por %p145, %p146
    %p148 = scmp.ne.s32.totalorder %s134, %s135
    %p149 = scmp.eq.s32.totalorder %s17, 1
    %p150 = por %p148, %p149
    %p152 = scmp.ne.s32.totalorder %s135, %s151
    %p153 = scmp.eq.s32.totalorder %s17, 0
    %p154 = por %p152, %p153
    %p155 = scmp.le.s32.totalorder 1, %s11
    %p156 = scmp.lt.s32.totalorder %s11, 3
    %p157 = pnand %p155, %p156
    %p158 = pneg %p157
    // Predicated region
    $region9: #{test_model_forward.1} parent=5 // pred_check
      _
    $region10: #{test_model_forward.1} parent=5 // pred_check_branch
      %160 = sbr.rel (%p157) target = $region12
    $region11: #{test_model_forward.1} parent=5 // pred_region
      %s161 = ssub.s32 %s11, 1
      // Predicated region
      $region13: #{test_model_forward.1} parent=11 // pred_check
        %p162 = pneg %p58
      $region14: #{test_model_forward.1} parent=11 // pred_check_branch
        %164 = sbr.rel (%p162) target = $region16
      $region15: #{test_model_forward.1} parent=11 // pred_region
        _
      $region16: #{test_model_forward.1} parent=11 // pred_fallthru
        _
      // Predicated region
      $region17: #{test_model_forward.1} parent=11 // pred_check
        %p165 = pneg %p79
      $region18: #{test_model_forward.1} parent=11 // pred_check_branch
        %167 = sbr.rel (%p165) target = $region20
      $region19: #{test_model_forward.1} parent=11 // pred_region
        _
      $region20: #{test_model_forward.1} parent=11 // pred_fallthru
        _
      // Predicated region
      $region21: #{test_model_forward.1} parent=11 // pred_check
        %p168 = pneg %p100
      $region22: #{test_model_forward.1} parent=11 // pred_check_branch
        %170 = sbr.rel (%p168) target = $region24
      $region23: #{test_model_forward.1} parent=11 // pred_region
        _
      $region24: #{test_model_forward.1} parent=11 // pred_fallthru
        _
      // Predicated region
      $region25: #{test_model_forward.1} parent=11 // pred_check
        %p171 = pneg %p121
      $region26: #{test_model_forward.1} parent=11 // pred_check_branch
        %173 = sbr.rel (%p171) target = $region28
      $region27: #{test_model_forward.1} parent=11 // pred_region
        _
      $region28: #{test_model_forward.1} parent=11 // pred_fallthru
        _
    $region12: #{test_model_forward.1} parent=5 // pred_fallthru
      _
    %p174 = scmp.lt.s32.totalorder %s11, 2
    // Predicated region
    $region29: #{test_model_forward.1} parent=5 // pred_check
      %p175 = pneg %p174
    $region30: #{test_model_forward.1} parent=5 // pred_check_branch
      %177 = sbr.rel (%p175) target = $region32
    $region31: #{test_model_forward.1} parent=5 // pred_region
      // Predicated region
      $region33: #{test_model_forward.1} parent=31 // pred_check
        %p178 = pneg %p31
      $region34: #{test_model_forward.1} parent=31 // pred_check_branch
        %180 = sbr.rel (%p178) target = $region36
      $region35: #{test_model_forward.1} parent=31 // pred_region
        %p181 = scmp.lt.s32.totalorder %s11, 1
        %s182 = scalar_select %p181, %s11, 1
        %s183 = smul.addr %s182, 3
        %s184 = smul.addr %s183, 8
        %s185 = scalar_lea.vmem %s0, %s184
      $region36: #{test_model_forward.1} parent=31 // pred_fallthru
        _
    $region32: #{test_model_forward.1} parent=5 // pred_fallthru
      _
    %p186 = scmp.le.s32.totalorder 1, %s11
    %p187 = scmp.lt.s32.totalorder %s11, 3
    %p188 = pnand %p186, %p187
    %p189 = pneg %p188
    // Predicated region
    $region37: #{test_model_forward.1} parent=5 // pred_check
      _
    $region38: #{test_model_forward.1} parent=5 // pred_check_branch
      %191 = sbr.rel (%p188) target = $region40
    $region39: #{test_model_forward.1} parent=5 // pred_region
      %s192 = ssub.s32 %s11, 1
      %p193 = scmp.lt.s32.totalorder %s16, 1
      %s194 = scalar_select %p193, %s16, 1
      %s195 = smul.addr %s194, 3
      %s196 = smul.addr %s195, 8
      %s197 = scalar_lea.vmem %s0, %s196
      %p198 = pneg %p37
      %p199 = pneg %p34
      %p200 = pneg %p58
      %p201 = pneg %p55
      %p202 = pneg %p79
      %p203 = pneg %p76
      %p204 = pneg %p100
      %p205 = pneg %p97
      %p206 = pneg %p121
      %p207 = pneg %p118
      %p208 = pneg %p147
      %p209 = pneg %p144
      %p210 = scmp.lt.s32.totalorder %s16, 1
      %s211 = scalar_select %p210, %s16, 1
      %s212 = smul.addr %s211, 4
      %s213 = smul.addr %s212, 8
      %s214 = scalar_lea.vmem %s5, %s213
      %p215 = scmp.lt.s32.totalorder %s16, 1
      %s216 = scalar_select %p215, %s16, 1
      %s217 = smul.addr %s216, 3
      %s218 = smul.addr %s217, 8
      %s219 = scalar_lea.vmem %s0, %s218
      %p220 = scmp.lt.s32.totalorder %s16, 1
      %s221 = scalar_select %p220, %s16, 1
      %s222 = smul.addr %s221, 4
      %s223 = smul.addr %s222, 8
      %s224 = scalar_lea.vmem %s5, %s223
      %v225 = vld [vmem:[%s219] sm:$0xff]
      %v226 = vld [vmem:[%s219 + $0x8] sm:$0xff]
      %v227 = vld [vmem:[%s219 + $0x10] sm:$0xff]
      %231 = vrot.lane.b32.xlu0 %v225, 127
      %v232 = vpop.permute.xlu0 %231
      %233 = vrot.lane.b32.xlu0 %v226, 127
      %v234 = vpop.permute.xlu0 %233
      %235 = vrot.lane.b32.xlu0 %v227, 127
      %v236 = vpop.permute.xlu0 %235
      %vm237 = vcmask 1039360
      %v238 = vsel %vm237, %v232, %v234
      %v239 = vsel %vm237, %v234, %v236
      %242 = vrot.lane.b32.xlu0 %v225, 126
      %v243 = vpop.permute.xlu0 %242
      %244 = vrot.lane.b32.xlu0 %v226, 126
      %v245 = vpop.permute.xlu0 %244
      %246 = vrot.lane.b32.xlu0 %v227, 126
      %v247 = vpop.permute.xlu0 %246
      %vm248 = vcmask 1031168
      %v249 = vsel %vm248, %v243, %v245
      %v250 = vsel %vm248, %v245, %v247
      %253 = vrot.lane.b32.xlu0 %v225, 112
      %v254 = vpop.permute.xlu0 %253
      %255 = vrot.lane.b32.xlu0 %v226, 112
      %v256 = vpop.permute.xlu0 %255
      %257 = vrot.lane.b32.xlu0 %v227, 112
      %v258 = vpop.permute.xlu0 %257
      %vm259 = vcmask 916480
      %v260 = vsel %vm259, %v254, %v256
      %v261 = vsel %vm259, %v256, %v258
      %264 = vrot.lane.b32.xlu0 %v225, 111
      %v265 = vpop.permute.xlu0 %264
      %266 = vrot.lane.b32.xlu0 %v226, 111
      %v267 = vpop.permute.xlu0 %266
      %268 = vrot.lane.b32.xlu0 %v227, 111
      %v269 = vpop.permute.xlu0 %268
      %vm270 = vcmask 908288
      %v271 = vsel %vm270, %v265, %v267
      %v272 = vsel %vm270, %v267, %v269
      %275 = vrot.lane.b32.xlu0 %v225, 110
      %v276 = vpop.permute.xlu0 %275
      %277 = vrot.lane.b32.xlu0 %v226, 110
      %v278 = vpop.permute.xlu0 %277
      %279 = vrot.lane.b32.xlu0 %v227, 110
      %v280 = vpop.permute.xlu0 %279
      %vm281 = vcmask 900096
      %v282 = vsel %vm281, %v276, %v278
      %v283 = vsel %vm281, %v278, %v280
      %286 = vrot.lane.b32.xlu0 %v225, 96
      %v287 = vpop.permute.xlu0 %286
      %288 = vrot.lane.b32.xlu0 %v226, 96
      %v289 = vpop.permute.xlu0 %288
      %290 = vrot.lane.b32.xlu0 %v227, 96
      %v291 = vpop.permute.xlu0 %290
      %vm292 = vcmask 785408
      %v293 = vsel %vm292, %v287, %v289
      %v294 = vsel %vm292, %v289, %v291
      %297 = vrot.lane.b32.xlu0 %v225, 95
      %v298 = vpop.permute.xlu0 %297
      %299 = vrot.lane.b32.xlu0 %v226, 95
      %v300 = vpop.permute.xlu0 %299
      %301 = vrot.lane.b32.xlu0 %v227, 95
      %v302 = vpop.permute.xlu0 %301
      %vm303 = vcmask 777216
      %v304 = vsel %vm303, %v298, %v300
      %v305 = vsel %vm303, %v300, %v302
      %308 = vrot.lane.b32.xlu0 %v225, 94
      %v309 = vpop.permute.xlu0 %308
      %310 = vrot.lane.b32.xlu0 %v226, 94
      %v311 = vpop.permute.xlu0 %310
      %312 = vrot.lane.b32.xlu0 %v227, 94
      %v313 = vpop.permute.xlu0 %312
      %vm314 = vcmask 769024
      %v315 = vsel %vm314, %v309, %v311
      %v316 = vsel %vm314, %v311, %v313
      %v319 = vld [vmem:[%s1] sm:$0xff]
      %v320 = vld [vmem:[%s2] sm:$0xff]
      %322 = vset.pattern.permute.xlu0 0
      %323 = vperm.xlu0 %322, %v320
      %v324 = vpop.permute.xlu0 %323
      %vm326 = vcmask 588800
      %v328 = vsel %vm326, %v319, 0
      %v330 = vand.u32 %v226, 4294901760
      %331 = vmatprep.subr.mxu0 %v330
      %v332 = vand.u32 %v225, 4294901760
      %333 = vmatpush1.msra.mxu0 %v332
      %v334 = vand.u32 %v239, 4294901760
      %335 = vmatprep.subr.mxu0 %v334
      %v336 = vand.u32 %v238, 4294901760
      %337 = vmatpush1.msra.mxu0 %v336
      %v338 = vand.u32 %v250, 4294901760
      %339 = vmatprep.subr.mxu0 %v338
      %v340 = vand.u32 %v249, 4294901760
      %341 = vmatpush1.msra.mxu0 %v340
      %v342 = vand.u32 %v261, 4294901760
      %343 = vmatprep.subr.mxu0 %v342
      %v344 = vand.u32 %v260, 4294901760
      %345 = vmatpush1.msra.mxu0 %v344
      %v346 = vand.u32 %v272, 4294901760
      %347 = vmatprep.subr.mxu0 %v346
      %v348 = vand.u32 %v271, 4294901760
      %349 = vmatpush1.msra.mxu0 %v348
      %v350 = vand.u32 %v283, 4294901760
      %351 = vmatprep.subr.mxu0 %v350
      %v352 = vand.u32 %v282, 4294901760
      %353 = vmatpush1.msra.mxu0 %v352
      %v354 = vand.u32 %v294, 4294901760
      %355 = vmatprep.subr.mxu0 %v354
      %v356 = vand.u32 %v293, 4294901760
      %357 = vmatpush1.msra.mxu0 %v356
      %v358 = vand.u32 %v305, 4294901760
      %359 = vmatprep.subr.mxu0 %v358
      %v360 = vand.u32 %v304, 4294901760
      %361 = vmatpush1.msra.mxu0 %v360
      %v362 = vand.u32 %v316, 4294901760
      %363 = vmatprep.subr.mxu0 %v362
      %v364 = vand.u32 %v315, 4294901760
      %365 = vmatpush1.msra.mxu0 %v364
      %366 = vmatprep.subr.mxu0 0.0
      %367 = vmatpush1.msra.mxu0 0.0
      %368 = vmatprep.subr.mxu0 0.0
      %369 = vmatpush1.msra.mxu0 0.0
      %370 = vmatprep.subr.mxu0 0.0
      %371 = vmatpush1.msra.mxu0 0.0
      %372 = vmatprep.subr.mxu0 0.0
      %373 = vmatpush1.msra.mxu0 0.0
      %374 = vmatprep.subr.mxu0 0.0
      %375 = vmatpush1.msra.mxu0 0.0
      %376 = vmatprep.subr.mxu0 0.0
      %377 = vmatpush1.msra.mxu0 0.0
      %378 = vmatprep.subr.mxu0 0.0
      %379 = vmatpush1.msra.mxu0 0.0
      %380 = vmatprep.subr.mxu0 0.0
      %381 = vmatpush1.msra.mxu0 0.0
      %382 = vmatprep.subr.mxu0 0.0
      %383 = vmatpush1.msra.mxu0 0.0
      %384 = vmatprep.subr.mxu0 0.0
      %385 = vmatpush1.msra.mxu0 0.0
      %386 = vmatprep.subr.mxu0 0.0
      %387 = vmatpush1.msra.mxu0 0.0
      %388 = vmatprep.subr.mxu0 0.0
      %389 = vmatpush1.msra.mxu0 0.0
      %390 = vmatprep.subr.mxu0 0.0
      %391 = vmatpush1.msra.mxu0 0.0
      %392 = vmatprep.subr.mxu0 0.0
      %393 = vmatpush1.msra.mxu0 0.0
      %394 = vmatprep.subr.mxu0 0.0
      %395 = vmatpush1.msra.mxu0 0.0
      %396 = vmatprep.subr.mxu0 0.0
      %397 = vmatpush1.msra.mxu0 0.0
      %398 = vmatprep.subr.mxu0 0.0
      %399 = vmatpush1.msra.mxu0 0.0
      %400 = vmatprep.subr.mxu0 0.0
      %401 = vmatpush1.msra.mxu0 0.0
      %402 = vmatprep.subr.mxu0 0.0
      %403 = vmatpush1.msra.mxu0 0.0
      %404 = vmatprep.subr.mxu0 0.0
      %405 = vmatpush1.msra.mxu0 0.0
      %406 = vmatprep.subr.mxu0 0.0
      %407 = vmatpush1.msra.mxu0 0.0
      %408 = vmatprep.subr.mxu0 0.0
      %409 = vmatpush1.msra.mxu0 0.0
      %410 = vmatprep.subr.mxu0 0.0
      %411 = vmatpush1.msra.mxu0 0.0
      %412 = vmatprep.mubr.f32.mxu0 0.0
      %v413 = vand.u32 %v328, 4294901760
      %v414 = vsub.f32 %v328, %v413
      %v415 = vand.u32 %v414, 4294901760
      %v416 = vsub.f32 %v414, %v415
      %v417 = vand.u32 %v416, 4294901760
      %418 = vmatmul.mubr.f32.gmra.mrb[0].mxu0 %v417
      %v419 = vpop.f32.mrb[0].mxu0
      %v420 = vadd.f32 %v324, %v419
      %v421 = vpop.f32.mrb[0].mxu0
      %v422 = vadd.f32 %v324, %v421
      %423 = vdwg.mxu0
      %v424 = vand.u32 %v226, 4294901760
      %v425 = vsub.f32 %v226, %v424
      %v426 = vand.u32 %v425, 4294901760
      %v427 = vsub.f32 %v425, %v426
      %v428 = vand.u32 %v427, 4294901760
      %429 = vmatprep.subr.mxu0 %v428
      %v430 = vand.u32 %v225, 4294901760
      %v431 = vsub.f32 %v225, %v430
      %v432 = vand.u32 %v431, 4294901760
      %v433 = vsub.f32 %v431, %v432
      %v434 = vand.u32 %v433, 4294901760
      %435 = vmatpush1.msra.mxu0 %v434
      %v436 = vand.u32 %v239, 4294901760
      %v437 = vsub.f32 %v239, %v436
      %v438 = vand.u32 %v437, 4294901760
      %v439 = vsub.f32 %v437, %v438
      %v440 = vand.u32 %v439, 4294901760
      %441 = vmatprep.subr.mxu0 %v440
      %v442 = vand.u32 %v238, 4294901760
      %v443 = vsub.f32 %v238, %v442
      %v444 = vand.u32 %v443, 4294901760
      %v445 = vsub.f32 %v443, %v444
      %v446 = vand.u32 %v445, 4294901760
      %447 = vmatpush1.msra.mxu0 %v446
      %v448 = vand.u32 %v250, 4294901760
      %v449 = vsub.f32 %v250, %v448
      %v450 = vand.u32 %v449, 4294901760
      %v451 = vsub.f32 %v449, %v450
      %v452 = vand.u32 %v451, 4294901760
      %453 = vmatprep.subr.mxu0 %v452
      %v454 = vand.u32 %v249, 4294901760
      %v455 = vsub.f32 %v249, %v454
      %v456 = vand.u32 %v455, 4294901760
      %v457 = vsub.f32 %v455, %v456
      %v458 = vand.u32 %v457, 4294901760
      %459 = vmatpush1.msra.mxu0 %v458
      %v460 = vand.u32 %v261, 4294901760
      %v461 = vsub.f32 %v261, %v460
      %v462 = vand.u32 %v461, 4294901760
      %v463 = vsub.f32 %v461, %v462
      %v464 = vand.u32 %v463, 4294901760
      %465 = vmatprep.subr.mxu0 %v464
      %v466 = vand.u32 %v260, 4294901760
      %v467 = vsub.f32 %v260, %v466
      %v468 = vand.u32 %v467, 4294901760
      %v469 = vsub.f32 %v467, %v468
      %v470 = vand.u32 %v469, 4294901760
      %471 = vmatpush1.msra.mxu0 %v470
      %v472 = vand.u32 %v272, 4294901760
      %v473 = vsub.f32 %v272, %v472
      %v474 = vand.u32 %v473, 4294901760
      %v475 = vsub.f32 %v473, %v474
      %v476 = vand.u32 %v475, 4294901760
      %477 = vmatprep.subr.mxu0 %v476
      %v478 = vand.u32 %v271, 4294901760
      %v479 = vsub.f32 %v271, %v478
      %v480 = vand.u32 %v479, 4294901760
      %v481 = vsub.f32 %v479, %v480
      %v482 = vand.u32 %v481, 4294901760
      %483 = vmatpush1.msra.mxu0 %v482
      %v484 = vand.u32 %v283, 4294901760
      %v485 = vsub.f32 %v283, %v484
      %v486 = vand.u32 %v485, 4294901760
      %v487 = vsub.f32 %v485, %v486
      %v488 = vand.u32 %v487, 4294901760
      %489 = vmatprep.subr.mxu0 %v488
      %v490 = vand.u32 %v282, 4294901760
      %v491 = vsub.f32 %v282, %v490
      %v492 = vand.u32 %v491, 4294901760
      %v493 = vsub.f32 %v491, %v492
      %v494 = vand.u32 %v493, 4294901760
      %495 = vmatpush1.msra.mxu0 %v494
      %v496 = vand.u32 %v294, 4294901760
      %v497 = vsub.f32 %v294, %v496
      %v498 = vand.u32 %v497, 4294901760
      %v499 = vsub.f32 %v497, %v498
      %v500 = vand.u32 %v499, 4294901760
      %501 = vmatprep.subr.mxu0 %v500
      %v502 = vand.u32 %v293, 4294901760
      %v503 = vsub.f32 %v293, %v502
      %v504 = vand.u32 %v503, 4294901760
      %v505 = vsub.f32 %v503, %v504
      %v506 = vand.u32 %v505, 4294901760
      %507 = vmatpush1.msra.mxu0 %v506
      %v508 = vand.u32 %v305, 4294901760
      %v509 = vsub.f32 %v305, %v508
      %v510 = vand.u32 %v509, 4294901760
      %v511 = vsub.f32 %v509, %v510
      %v512 = vand.u32 %v511, 4294901760
      %513 = vmatprep.subr.mxu0 %v512
      %v514 = vand.u32 %v304, 4294901760
      %v515 = vsub.f32 %v304, %v514
      %v516 = vand.u32 %v515, 4294901760
      %v517 = vsub.f32 %v515, %v516
      %v518 = vand.u32 %v517, 4294901760
      %519 = vmatpush1.msra.mxu0 %v518
      %v520 = vand.u32 %v316, 4294901760
      %v521 = vsub.f32 %v316, %v520
      %v522 = vand.u32 %v521, 4294901760
      %v523 = vsub.f32 %v521, %v522
      %v524 = vand.u32 %v523, 4294901760
      %525 = vmatprep.subr.mxu0 %v524
      %v526 = vand.u32 %v315, 4294901760
      %v527 = vsub.f32 %v315, %v526
      %v528 = vand.u32 %v527, 4294901760
      %v529 = vsub.f32 %v527, %v528
      %v530 = vand.u32 %v529, 4294901760
      %531 = vmatpush1.msra.mxu0 %v530
      %532 = vmatprep.subr.mxu0 0.0
      %533 = vmatpush1.msra.mxu0 0.0
      %534 = vmatprep.subr.mxu0 0.0
      %535 = vmatpush1.msra.mxu0 0.0
      %536 = vmatprep.subr.mxu0 0.0
      %537 = vmatpush1.msra.mxu0 0.0
      %538 = vmatprep.subr.mxu0 0.0
      %539 = vmatpush1.msra.mxu0 0.0
      %540 = vmatprep.subr.mxu0 0.0
      %541 = vmatpush1.msra.mxu0 0.0
      %542 = vmatprep.subr.mxu0 0.0
      %543 = vmatpush1.msra.mxu0 0.0
      %544 = vmatprep.subr.mxu0 0.0
      %545 = vmatpush1.msra.mxu0 0.0
      %546 = vmatprep.subr.mxu0 0.0
      %547 = vmatpush1.msra.mxu0 0.0
      %548 = vmatprep.subr.mxu0 0.0
      %549 = vmatpush1.msra.mxu0 0.0
      %550 = vmatprep.subr.mxu0 0.0
      %551 = vmatpush1.msra.mxu0 0.0
      %552 = vmatprep.subr.mxu0 0.0
      %553 = vmatpush1.msra.mxu0 0.0
      %554 = vmatprep.subr.mxu0 0.0
      %555 = vmatpush1.msra.mxu0 0.0
      %556 = vmatprep.subr.mxu0 0.0
      %557 = vmatpush1.msra.mxu0 0.0
      %558 = vmatprep.subr.mxu0 0.0
      %559 = vmatpush1.msra.mxu0 0.0
      %560 = vmatprep.subr.mxu0 0.0
      %561 = vmatpush1.msra.mxu0 0.0
      %562 = vmatprep.subr.mxu0 0.0
      %563 = vmatpush1.msra.mxu0 0.0
      %564 = vmatprep.subr.mxu0 0.0
      %565 = vmatpush1.msra.mxu0 0.0
      %566 = vmatprep.subr.mxu0 0.0
      %567 = vmatpush1.msra.mxu0 0.0
      %568 = vmatprep.subr.mxu0 0.0
      %569 = vmatpush1.msra.mxu0 0.0
      %570 = vmatprep.subr.mxu0 0.0
      %571 = vmatpush1.msra.mxu0 0.0
      %572 = vmatprep.subr.mxu0 0.0
      %573 = vmatpush1.msra.mxu0 0.0
      %574 = vmatprep.subr.mxu0 0.0
      %575 = vmatpush1.msra.mxu0 0.0
      %576 = vmatprep.subr.mxu0 0.0
      %577 = vmatpush1.msra.mxu0 0.0
      %578 = vmatprep.mubr.f32.mxu0 0.0
      %v579 = vand.u32 %v328, 4294901760
      %580 = vmatmul.mubr.f32.gmra.mrb[0].mxu0 %v579
      %v581 = vpop.f32.mrb[0].mxu0
      %v582 = vadd.f32 %v420, %v581
      %v583 = vpop.f32.mrb[0].mxu0
      %v584 = vadd.f32 %v422, %v583
      %585 = vdwg.mxu0
      %v586 = vand.u32 %v226, 4294901760
      %v587 = vsub.f32 %v226, %v586
      %588 = vmatprep.subr.mxu0 %v587
      %v589 = vand.u32 %v225, 4294901760
      %v590 = vsub.f32 %v225, %v589
      %591 = vmatpush1.msra.mxu0 %v590
      %v592 = vand.u32 %v239, 4294901760
      %v593 = vsub.f32 %v239, %v592
      %594 = vmatprep.subr.mxu0 %v593
      %v595 = vand.u32 %v238, 4294901760
      %v596 = vsub.f32 %v238, %v595
      %597 = vmatpush1.msra.mxu0 %v596
      %v598 = vand.u32 %v250, 4294901760
      %v599 = vsub.f32 %v250, %v598
      %600 = vmatprep.subr.mxu0 %v599
      %v601 = vand.u32 %v249, 4294901760
      %v602 = vsub.f32 %v249, %v601
      %603 = vmatpush1.msra.mxu0 %v602
      %v604 = vand.u32 %v261, 4294901760
      %v605 = vsub.f32 %v261, %v604
      %606 = vmatprep.subr.mxu0 %v605
      %v607 = vand.u32 %v260, 4294901760
      %v608 = vsub.f32 %v260, %v607
      %609 = vmatpush1.msra.mxu0 %v608
      %v610 = vand.u32 %v272, 4294901760
      %v611 = vsub.f32 %v272, %v610
      %612 = vmatprep.subr.mxu0 %v611
      %v613 = vand.u32 %v271, 4294901760
      %v614 = vsub.f32 %v271, %v613
      %615 = vmatpush1.msra.mxu0 %v614
      %v616 = vand.u32 %v283, 4294901760
      %v617 = vsub.f32 %v283, %v616
      %618 = vmatprep.subr.mxu0 %v617
      %v619 = vand.u32 %v282, 4294901760
      %v620 = vsub.f32 %v282, %v619
      %621 = vmatpush1.msra.mxu0 %v620
      %v622 = vand.u32 %v294, 4294901760
      %v623 = vsub.f32 %v294, %v622
      %624 = vmatprep.subr.mxu0 %v623
      %v625 = vand.u32 %v293, 4294901760
      %v626 = vsub.f32 %v293, %v625
      %627 = vmatpush1.msra.mxu0 %v626
      %v628 = vand.u32 %v305, 4294901760
      %v629 = vsub.f32 %v305, %v628
      %630 = vmatprep.subr.mxu0 %v629
      %v631 = vand.u32 %v304, 4294901760
      %v632 = vsub.f32 %v304, %v631
      %633 = vmatpush1.msra.mxu0 %v632
      %v634 = vand.u32 %v316, 4294901760
      %v635 = vsub.f32 %v316, %v634
      %636 = vmatprep.subr.mxu0 %v635
      %v637 = vand.u32 %v315, 4294901760
      %v638 = vsub.f32 %v315, %v637
      %639 = vmatpush1.msra.mxu0 %v638
      %640 = vmatprep.subr.mxu0 0.0
      %641 = vmatpush1.msra.mxu0 0.0
      %642 = vmatprep.subr.mxu0 0.0
      %643 = vmatpush1.msra.mxu0 0.0
      %644 = vmatprep.subr.mxu0 0.0
      %645 = vmatpush1.msra.mxu0 0.0
      %646 = vmatprep.subr.mxu0 0.0
      %647 = vmatpush1.msra.mxu0 0.0
      %648 = vmatprep.subr.mxu0 0.0
      %649 = vmatpush1.msra.mxu0 0.0
      %650 = vmatprep.subr.mxu0 0.0
      %651 = vmatpush1.msra.mxu0 0.0
      %652 = vmatprep.subr.mxu0 0.0
      %653 = vmatpush1.msra.mxu0 0.0
      %654 = vmatprep.subr.mxu0 0.0
      %655 = vmatpush1.msra.mxu0 0.0
      %656 = vmatprep.subr.mxu0 0.0
      %657 = vmatpush1.msra.mxu0 0.0
      %658 = vmatprep.subr.mxu0 0.0
      %659 = vmatpush1.msra.mxu0 0.0
      %660 = vmatprep.subr.mxu0 0.0
      %661 = vmatpush1.msra.mxu0 0.0
      %662 = vmatprep.subr.mxu0 0.0
      %663 = vmatpush1.msra.mxu0 0.0
      %664 = vmatprep.subr.mxu0 0.0
      %665 = vmatpush1.msra.mxu0 0.0
      %666 = vmatprep.subr.mxu0 0.0
      %667 = vmatpush1.msra.mxu0 0.0
      %668 = vmatprep.subr.mxu0 0.0
      %669 = vmatpush1.msra.mxu0 0.0
      %670 = vmatprep.subr.mxu0 0.0
      %671 = vmatpush1.msra.mxu0 0.0
      %672 = vmatprep.subr.mxu0 0.0
      %673 = vmatpush1.msra.mxu0 0.0
      %674 = vmatprep.subr.mxu0 0.0
      %675 = vmatpush1.msra.mxu0 0.0
      %676 = vmatprep.subr.mxu0 0.0
      %677 = vmatpush1.msra.mxu0 0.0
      %678 = vmatprep.subr.mxu0 0.0
      %679 = vmatpush1.msra.mxu0 0.0
      %680 = vmatprep.subr.mxu0 0.0
      %681 = vmatpush1.msra.mxu0 0.0
      %682 = vmatprep.subr.mxu0 0.0
      %683 = vmatpush1.msra.mxu0 0.0
      %684 = vmatprep.subr.mxu0 0.0
      %685 = vmatpush1.msra.mxu0 0.0
      %686 = vmatprep.mubr.f32.mxu0 0.0
      %v687 = vand.u32 %v328, 4294901760
      %v688 = vsub.f32 %v328, %v687
      %689 = vmatmul.mubr.f32.gmra.mrb[0].mxu0 %v688
      %v690 = vpop.f32.mrb[0].mxu0
      %v691 = vadd.f32 %v582, %v690
      %v692 = vpop.f32.mrb[0].mxu0
      %v693 = vadd.f32 %v584, %v692
      %694 = vdwg.mxu0
      %v695 = vand.u32 %v226, 4294901760
      %696 = vmatprep.subr.mxu0 %v695
      %v697 = vand.u32 %v225, 4294901760
      %698 = vmatpush1.msra.mxu0 %v697
      %v699 = vand.u32 %v239, 4294901760
      %700 = vmatprep.subr.mxu0 %v699
      %v701 = vand.u32 %v238, 4294901760
      %702 = vmatpush1.msra.mxu0 %v701
      %v703 = vand.u32 %v250, 4294901760
      %704 = vmatprep.subr.mxu0 %v703
      %v705 = vand.u32 %v249, 4294901760
      %706 = vmatpush1.msra.mxu0 %v705
      %v707 = vand.u32 %v261, 4294901760
      %708 = vmatprep.subr.mxu0 %v707
      %v709 = vand.u32 %v260, 4294901760
      %710 = vmatpush1.msra.mxu0 %v709
      %v711 = vand.u32 %v272, 4294901760
      %712 = vmatprep.subr.mxu0 %v711
      %v713 = vand.u32 %v271, 4294901760
      %714 = vmatpush1.msra.mxu0 %v713
      %v715 = vand.u32 %v283, 4294901760
      %716 = vmatprep.subr.mxu0 %v715
      %v717 = vand.u32 %v282, 4294901760
      %718 = vmatpush1.msra.mxu0 %v717
      %v719 = vand.u32 %v294, 4294901760
      %720 = vmatprep.subr.mxu0 %v719
      %v721 = vand.u32 %v293, 4294901760
      %722 = vmatpush1.msra.mxu0 %v721
      %v723 = vand.u32 %v305, 4294901760
      %724 = vmatprep.subr.mxu0 %v723
      %v725 = vand.u32 %v304, 4294901760
      %726 = vmatpush1.msra.mxu0 %v725
      %v727 = vand.u32 %v316, 4294901760
      %728 = vmatprep.subr.mxu0 %v727
      %v729 = vand.u32 %v315, 4294901760
      %730 = vmatpush1.msra.mxu0 %v729
      %731 = vmatprep.subr.mxu0 0.0
      %732 = vmatpush1.msra.mxu0 0.0
      %733 = vmatprep.subr.mxu0 0.0
      %734 = vmatpush1.msra.mxu0 0.0
      %735 = vmatprep.subr.mxu0 0.0
      %736 = vmatpush1.msra.mxu0 0.0
      %737 = vmatprep.subr.mxu0 0.0
      %738 = vmatpush1.msra.mxu0 0.0
      %739 = vmatprep.subr.mxu0 0.0
      %740 = vmatpush1.msra.mxu0 0.0
      %741 = vmatprep.subr.mxu0 0.0
      %742 = vmatpush1.msra.mxu0 0.0
      %743 = vmatprep.subr.mxu0 0.0
      %744 = vmatpush1.msra.mxu0 0.0
      %745 = vmatprep.subr.mxu0 0.0
      %746 = vmatpush1.msra.mxu0 0.0
      %747 = vmatprep.subr.mxu0 0.0
      %748 = vmatpush1.msra.mxu0 0.0
      %749 = vmatprep.subr.mxu0 0.0
      %750 = vmatpush1.msra.mxu0 0.0
      %751 = vmatprep.subr.mxu0 0.0
      %752 = vmatpush1.msra.mxu0 0.0
      %753 = vmatprep.subr.mxu0 0.0
      %754 = vmatpush1.msra.mxu0 0.0
      %755 = vmatprep.subr.mxu0 0.0
      %756 = vmatpush1.msra.mxu0 0.0
      %757 = vmatprep.subr.mxu0 0.0
      %758 = vmatpush1.msra.mxu0 0.0
      %759 = vmatprep.subr.mxu0 0.0
      %760 = vmatpush1.msra.mxu0 0.0
      %761 = vmatprep.subr.mxu0 0.0
      %762 = vmatpush1.msra.mxu0 0.0
      %763 = vmatprep.subr.mxu0 0.0
      %764 = vmatpush1.msra.mxu0 0.0
      %765 = vmatprep.subr.mxu0 0.0
      %766 = vmatpush1.msra.mxu0 0.0
      %767 = vmatprep.subr.mxu0 0.0
      %768 = vmatpush1.msra.mxu0 0.0
      %769 = vmatprep.subr.mxu0 0.0
      %770 = vmatpush1.msra.mxu0 0.0
      %771 = vmatprep.subr.mxu0 0.0
      %772 = vmatpush1.msra.mxu0 0.0
      %773 = vmatprep.subr.mxu0 0.0
      %774 = vmatpush1.msra.mxu0 0.0
      %775 = vmatprep.subr.mxu0 0.0
      %776 = vmatpush1.msra.mxu0 0.0
      %777 = vmatprep.mubr.f32.mxu0 0.0
      %v778 = vand.u32 %v328, 4294901760
      %v779 = vsub.f32 %v328, %v778
      %v780 = vand.u32 %v779, 4294901760
      %781 = vmatmul.mubr.f32.gmra.mrb[0].mxu0 %v780
      %v782 = vpop.f32.mrb[0].mxu0
      %v783 = vadd.f32 %v691, %v782
      %v784 = vpop.f32.mrb[0].mxu0
      %v785 = vadd.f32 %v693, %v784
      %786 = vdwg.mxu0
      %v787 = vand.u32 %v226, 4294901760
      %v788 = vsub.f32 %v226, %v787
      %v789 = vand.u32 %v788, 4294901760
      %790 = vmatprep.subr.mxu0 %v789
      %v791 = vand.u32 %v225, 4294901760
      %v792 = vsub.f32 %v225, %v791
      %v793 = vand.u32 %v792, 4294901760
      %794 = vmatpush1.msra.mxu0 %v793
      %v795 = vand.u32 %v239, 4294901760
      %v796 = vsub.f32 %v239, %v795
      %v797 = vand.u32 %v796, 4294901760
      %798 = vmatprep.subr.mxu0 %v797
      %v799 = vand.u32 %v238, 4294901760
      %v800 = vsub.f32 %v238, %v799
      %v801 = vand.u32 %v800, 4294901760
      %802 = vmatpush1.msra.mxu0 %v801
      %v803 = vand.u32 %v250, 4294901760
      %v804 = vsub.f32 %v250, %v803
      %v805 = vand.u32 %v804, 4294901760
      %806 = vmatprep.subr.mxu0 %v805
      %v807 = vand.u32 %v249, 4294901760
      %v808 = vsub.f32 %v249, %v807
      %v809 = vand.u32 %v808, 4294901760
      %810 = vmatpush1.msra.mxu0 %v809
      %v811 = vand.u32 %v261, 4294901760
      %v812 = vsub.f32 %v261, %v811
      %v813 = vand.u32 %v812, 4294901760
      %814 = vmatprep.subr.mxu0 %v813
      %v815 = vand.u32 %v260, 4294901760
      %v816 = vsub.f32 %v260, %v815
      %v817 = vand.u32 %v816, 4294901760
      %818 = vmatpush1.msra.mxu0 %v817
      %v819 = vand.u32 %v272, 4294901760
      %v820 = vsub.f32 %v272, %v819
      %v821 = vand.u32 %v820, 4294901760
      %822 = vmatprep.subr.mxu0 %v821
      %v823 = vand.u32 %v271, 4294901760
      %v824 = vsub.f32 %v271, %v823
      %v825 = vand.u32 %v824, 4294901760
      %826 = vmatpush1.msra.mxu0 %v825
      %v827 = vand.u32 %v283, 4294901760
      %v828 = vsub.f32 %v283, %v827
      %v829 = vand.u32 %v828, 4294901760
      %830 = vmatprep.subr.mxu0 %v829
      %v831 = vand.u32 %v282, 4294901760
      %v832 = vsub.f32 %v282, %v831
      %v833 = vand.u32 %v832, 4294901760
      %834 = vmatpush1.msra.mxu0 %v833
      %v835 = vand.u32 %v294, 4294901760
      %v836 = vsub.f32 %v294, %v835
      %v837 = vand.u32 %v836, 4294901760
      %838 = vmatprep.subr.mxu0 %v837
      %v839 = vand.u32 %v293, 4294901760
      %v840 = vsub.f32 %v293, %v839
      %v841 = vand.u32 %v840, 4294901760
      %842 = vmatpush1.msra.mxu0 %v841
      %v843 = vand.u32 %v305, 4294901760
      %v844 = vsub.f32 %v305, %v843
      %v845 = vand.u32 %v844, 4294901760
      %846 = vmatprep.subr.mxu0 %v845
      %v847 = vand.u32 %v304, 4294901760
      %v848 = vsub.f32 %v304, %v847
      %v849 = vand.u32 %v848, 4294901760
      %850 = vmatpush1.msra.mxu0 %v849
      %v851 = vand.u32 %v316, 4294901760
      %v852 = vsub.f32 %v316, %v851
      %v853 = vand.u32 %v852, 4294901760
      %854 = vmatprep.subr.mxu0 %v853
      %v855 = vand.u32 %v315, 4294901760
      %v856 = vsub.f32 %v315, %v855
      %v857 = vand.u32 %v856, 4294901760
      %858 = vmatpush1.msra.mxu0 %v857
      %859 = vmatprep.subr.mxu0 0.0
      %860 = vmatpush1.msra.mxu0 0.0
      %861 = vmatprep.subr.mxu0 0.0
      %862 = vmatpush1.msra.mxu0 0.0
      %863 = vmatprep.subr.mxu0 0.0
      %864 = vmatpush1.msra.mxu0 0.0
      %865 = vmatprep.subr.mxu0 0.0
      %866 = vmatpush1.msra.mxu0 0.0
      %867 = vmatprep.subr.mxu0 0.0
      %868 = vmatpush1.msra.mxu0 0.0
      %869 = vmatprep.subr.mxu0 0.0
      %870 = vmatpush1.msra.mxu0 0.0
      %871 = vmatprep.subr.mxu0 0.0
      %872 = vmatpush1.msra.mxu0 0.0
      %873 = vmatprep.subr.mxu0 0.0
      %874 = vmatpush1.msra.mxu0 0.0
      %875 = vmatprep.subr.mxu0 0.0
      %876 = vmatpush1.msra.mxu0 0.0
      %877 = vmatprep.subr.mxu0 0.0
      %878 = vmatpush1.msra.mxu0 0.0
      %879 = vmatprep.subr.mxu0 0.0
      %880 = vmatpush1.msra.mxu0 0.0
      %881 = vmatprep.subr.mxu0 0.0
      %882 = vmatpush1.msra.mxu0 0.0
      %883 = vmatprep.subr.mxu0 0.0
      %884 = vmatpush1.msra.mxu0 0.0
      %885 = vmatprep.subr.mxu0 0.0
      %886 = vmatpush1.msra.mxu0 0.0
      %887 = vmatprep.subr.mxu0 0.0
      %888 = vmatpush1.msra.mxu0 0.0
      %889 = vmatprep.subr.mxu0 0.0
      %890 = vmatpush1.msra.mxu0 0.0
      %891 = vmatprep.subr.mxu0 0.0
      %892 = vmatpush1.msra.mxu0 0.0
      %893 = vmatprep.subr.mxu0 0.0
      %894 = vmatpush1.msra.mxu0 0.0
      %895 = vmatprep.subr.mxu0 0.0
      %896 = vmatpush1.msra.mxu0 0.0
      %897 = vmatprep.subr.mxu0 0.0
      %898 = vmatpush1.msra.mxu0 0.0
      %899 = vmatprep.subr.mxu0 0.0
      %900 = vmatpush1.msra.mxu0 0.0
      %901 = vmatprep.subr.mxu0 0.0
      %902 = vmatpush1.msra.mxu0 0.0
      %903 = vmatprep.subr.mxu0 0.0
      %904 = vmatpush1.msra.mxu0 0.0
      %905 = vmatprep.mubr.f32.mxu0 0.0
      %v906 = vand.u32 %v328, 4294901760
      %907 = vmatmul.mubr.f32.gmra.mrb[0].mxu0 %v906
      %v908 = vpop.f32.mrb[0].mxu0
      %v909 = vadd.f32 %v783, %v908
      %v910 = vpop.f32.mrb[0].mxu0
      %v911 = vadd.f32 %v785, %v910
      %912 = vdwg.mxu0
      %v913 = vand.u32 %v226, 4294901760
      %914 = vmatprep.subr.mxu0 %v913
      %v915 = vand.u32 %v225, 4294901760
      %916 = vmatpush1.msra.mxu0 %v915
      %v917 = vand.u32 %v239, 4294901760
      %918 = vmatprep.subr.mxu0 %v917
      %v919 = vand.u32 %v238, 4294901760
      %920 = vmatpush1.msra.mxu0 %v919
      %v921 = vand.u32 %v250, 4294901760
      %922 = vmatprep.subr.mxu0 %v921
      %v923 = vand.u32 %v249, 4294901760
      %924 = vmatpush1.msra.mxu0 %v923
      %v925 = vand.u32 %v261, 4294901760
      %926 = vmatprep.subr.mxu0 %v925
      %v927 = vand.u32 %v260, 4294901760
      %928 = vmatpush1.msra.mxu0 %v927
      %v929 = vand.u32 %v272, 4294901760
      %930 = vmatprep.subr.mxu0 %v929
      %v931 = vand.u32 %v271, 4294901760
      %932 = vmatpush1.msra.mxu0 %v931
      %v933 = vand.u32 %v283, 4294901760
      %934 = vmatprep.subr.mxu0 %v933
      %v935 = vand.u32 %v282, 4294901760
      %936 = vmatpush1.msra.mxu0 %v935
      %v937 = vand.u32 %v294, 4294901760
      %938 = vmatprep.subr.mxu0 %v937
      %v939 = vand.u32 %v293, 4294901760
      %940 = vmatpush1.msra.mxu0 %v939
      %v941 = vand.u32 %v305, 4294901760
      %942 = vmatprep.subr.mxu0 %v941
      %v943 = vand.u32 %v304, 4294901760
      %944 = vmatpush1.msra.mxu0 %v943
      %v945 = vand.u32 %v316, 4294901760
      %946 = vmatprep.subr.mxu0 %v945
      %v947 = vand.u32 %v315, 4294901760
      %948 = vmatpush1.msra.mxu0 %v947
      %949 = vmatprep.subr.mxu0 0.0
      %950 = vmatpush1.msra.mxu0 0.0
      %951 = vmatprep.subr.mxu0 0.0
      %952 = vmatpush1.msra.mxu0 0.0
      %953 = vmatprep.subr.mxu0 0.0
      %954 = vmatpush1.msra.mxu0 0.0
      %955 = vmatprep.subr.mxu0 0.0
      %956 = vmatpush1.msra.mxu0 0.0
      %957 = vmatprep.subr.mxu0 0.0
      %958 = vmatpush1.msra.mxu0 0.0
      %959 = vmatprep.subr.mxu0 0.0
      %960 = vmatpush1.msra.mxu0 0.0
      %961 = vmatprep.subr.mxu0 0.0
      %962 = vmatpush1.msra.mxu0 0.0
      %963 = vmatprep.subr.mxu0 0.0
      %964 = vmatpush1.msra.mxu0 0.0
      %965 = vmatprep.subr.mxu0 0.0
      %966 = vmatpush1.msra.mxu0 0.0
      %967 = vmatprep.subr.mxu0 0.0
      %968 = vmatpush1.msra.mxu0 0.0
      %969 = vmatprep.subr.mxu0 0.0
      %970 = vmatpush1.msra.mxu0 0.0
      %971 = vmatprep.subr.mxu0 0.0
      %972 = vmatpush1.msra.mxu0 0.0
      %973 = vmatprep.subr.mxu0 0.0
      %974 = vmatpush1.msra.mxu0 0.0
      %975 = vmatprep.subr.mxu0 0.0
      %976 = vmatpush1.msra.mxu0 0.0
      %977 = vmatprep.subr.mxu0 0.0
      %978 = vmatpush1.msra.mxu0 0.0
      %979 = vmatprep.subr.mxu0 0.0
      %980 = vmatpush1.msra.mxu0 0.0
      %981 = vmatprep.subr.mxu0 0.0
      %982 = vmatpush1.msra.mxu0 0.0
      %983 = vmatprep.subr.mxu0 0.0
      %984 = vmatpush1.msra.mxu0 0.0
      %985 = vmatprep.subr.mxu0 0.0
      %986 = vmatpush1.msra.mxu0 0.0
      %987 = vmatprep.subr.mxu0 0.0
      %988 = vmatpush1.msra.mxu0 0.0
      %989 = vmatprep.subr.mxu0 0.0
      %990 = vmatpush1.msra.mxu0 0.0
      %991 = vmatprep.subr.mxu0 0.0
      %992 = vmatpush1.msra.mxu0 0.0
      %993 = vmatprep.subr.mxu0 0.0
      %994 = vmatpush1.msra.mxu0 0.0
      %995 = vmatprep.mubr.f32.mxu0 0.0
      %v996 = vand.u32 %v328, 4294901760
      %997 = vmatmul.mubr.f32.gmra.mrb[0].mxu0 %v996
      %v998 = vpop.f32.mrb[0].mxu0
      %v999 = vadd.f32 %v909, %v998
      %v1000 = vpop.f32.mrb[0].mxu0
      %v1001 = vadd.f32 %v911, %v1000
      %1002 = vdwg.mxu0
      %v1003 = vsub.f32 0.0, %v999
      %v1004 = vsub.f32 0.0, %v1001
      %v1005 = vmul.f32 %v1003, 1.442695
      %v1006 = vpow.pop %v1005
      %v1007 = vmul.f32 %v1004, 1.442695
      %v1008 = vpow.pop %v1007
      %v1009 = vadd.f32 %v1006, 1.0
      %v1010 = vadd.f32 %v1008, 1.0
      %v1011 = vrcp.pop %v1009
      %v1012 = vrcp.pop %v1010
      %v1013 = vmul.f32 %v1009, %v1011
      %v1014 = vmul.f32 %v1010, %v1012
      %v1015 = vsub.f32 2.0, %v1013
      %v1016 = vsub.f32 2.0, %v1014
      %v1017 = vmul.f32 %v1011, %v1015
      %v1018 = vmul.f32 %v1012, %v1016
      %v1019 = vmul.f32 %v999, %v1017
      %v1020 = vmul.f32 %v1001, %v1018
      %v1021 = vld [vmem:[%s3] sm:$0xff]
      %v1022 = vld [vmem:[%s3 + $0x8] sm:$0xff]
      %v1023 = vld [vmem:[%s4] sm:$0xff]
      %v1024 = vld [vmem:[%s4 + $0x8] sm:$0xff]
      %1026 = vset.pattern.permute.xlu0 0
      %1027 = vperm.xlu0 %1026, %v1023
      %v1028 = vpop.permute.xlu0 %1027
      %1031 = vset.pattern.permute.xlu0 0
      %1032 = vperm.xlu0 %1031, %v1024
      %v1033 = vpop.permute.xlu0 %1032
      %vm1035 = vcmask 64512
      %v1037 = vsel %vm1035, %v1021, 0
      %v1040 = vsel %vm1035, %v1022, 0
      %v1042 = vand.u32 %v1020, 4294901760
      %1043 = vmatprep.subr.mxu0 %v1042
      %v1044 = vand.u32 %v1019, 4294901760
      %1045 = vmatpush1.msra.mxu0 %v1044
      %1046 = vmatprep.subr.mxu0 0.0
      %1047 = vmatpush1.msra.mxu0 0.0
      %1048 = vmatprep.subr.mxu0 0.0
      %1049 = vmatpush1.msra.mxu0 0.0
      %1050 = vmatprep.subr.mxu0 0.0
      %1051 = vmatpush1.msra.mxu0 0.0
      %1052 = vmatprep.subr.mxu0 0.0
      %1053 = vmatpush1.msra.mxu0 0.0
      %1054 = vmatprep.subr.mxu0 0.0
      %1055 = vmatpush1.msra.mxu0 0.0
      %1056 = vmatprep.subr.mxu0 0.0
      %1057 = vmatpush1.msra.mxu0 0.0
      %1058 = vmatprep.subr.mxu0 0.0
      %1059 = vmatpush1.msra.mxu0 0.0
      %1060 = vmatprep.subr.mxu0 0.0
      %1061 = vmatpush1.msra.mxu0 0.0
      %1062 = vmatprep.subr.mxu0 0.0
      %1063 = vmatpush1.msra.mxu0 0.0
      %1064 = vmatprep.subr.mxu0 0.0
      %1065 = vmatpush1.msra.mxu0 0.0
      %1066 = vmatprep.subr.mxu0 0.0
      %1067 = vmatpush1.msra.mxu0 0.0
      %1068 = vmatprep.subr.mxu0 0.0
      %1069 = vmatpush1.msra.mxu0 0.0
      %1070 = vmatprep.subr.mxu0 0.0
      %1071 = vmatpush1.msra.mxu0 0.0
      %1072 = vmatprep.subr.mxu0 0.0
      %1073 = vmatpush1.msra.mxu0 0.0
      %1074 = vmatprep.subr.mxu0 0.0
      %1075 = vmatpush1.msra.mxu0 0.0
      %1076 = vmatprep.subr.mxu0 0.0
      %1077 = vmatpush1.msra.mxu0 0.0
      %1078 = vmatprep.subr.mxu0 0.0
      %1079 = vmatpush1.msra.mxu0 0.0
      %1080 = vmatprep.subr.mxu0 0.0
      %1081 = vmatpush1.msra.mxu0 0.0
      %1082 = vmatprep.subr.mxu0 0.0
      %1083 = vmatpush1.msra.mxu0 0.0
      %1084 = vmatprep.subr.mxu0 0.0
      %1085 = vmatpush1.msra.mxu0 0.0
      %1086 = vmatprep.subr.mxu0 0.0
      %1087 = vmatpush1.msra.mxu0 0.0
      %1088 = vmatprep.subr.mxu0 0.0
      %1089 = vmatpush1.msra.mxu0 0.0
      %1090 = vmatprep.subr.mxu0 0.0
      %1091 = vmatpush1.msra.mxu0 0.0
      %1092 = vmatprep.subr.mxu0 0.0
      %1093 = vmatpush1.msra.mxu0 0.0
      %1094 = vmatprep.subr.mxu0 0.0
      %1095 = vmatpush1.msra.mxu0 0.0
      %1096 = vmatprep.subr.mxu0 0.0
      %1097 = vmatpush1.msra.mxu0 0.0
      %1098 = vmatprep.subr.mxu0 0.0
      %1099 = vmatpush1.msra.mxu0 0.0
      %1100 = vmatprep.subr.mxu0 0.0
      %1101 = vmatpush1.msra.mxu0 0.0
      %1102 = vmatprep.subr.mxu0 0.0
      %1103 = vmatpush1.msra.mxu0 0.0
      %1104 = vmatprep.subr.mxu0 0.0
      %1105 = vmatpush1.msra.mxu0 0.0
      %1106 = vmatprep.subr.mxu0 0.0
      %1107 = vmatpush1.msra.mxu0 0.0
      %1108 = vmatprep.mubr.f32.mxu0 0.0
      %v1109 = vand.u32 %v1037, 4294901760
      %v1110 = vsub.f32 %v1037, %v1109
      %v1111 = vand.u32 %v1110, 4294901760
      %v1112 = vsub.f32 %v1110, %v1111
      %v1113 = vand.u32 %v1112, 4294901760
      %1114 = vmatmul.mubr.f32.gmra.mrb[0].mxu0 %v1113
      %v1115 = vpop.f32.mrb[0].mxu0
      %v1116 = vadd.f32 %v1028, %v1115
      %v1117 = vpop.f32.mrb[0].mxu0
      %v1118 = vadd.f32 %v1028, %v1117
      %1119 = vmatprep.mubr.f32.mxu0 0.0
      %v1120 = vand.u32 %v1040, 4294901760
      %v1121 = vsub.f32 %v1040, %v1120
      %v1122 = vand.u32 %v1121, 4294901760
      %v1123 = vsub.f32 %v1121, %v1122
      %v1124 = vand.u32 %v1123, 4294901760
      %1125 = vmatmul.mubr.f32.gmra.mrb[0].mxu0 %v1124
      %v1126 = vpop.f32.mrb[0].mxu0
      %v1127 = vadd.f32 %v1033, %v1126
      %v1128 = vpop.f32.mrb[0].mxu0
      %v1129 = vadd.f32 %v1033, %v1128
      %1130 = vdwg.mxu0
      %v1131 = vand.u32 %v1020, 4294901760
      %v1132 = vsub.f32 %v1020, %v1131
      %v1133 = vand.u32 %v1132, 4294901760
      %v1134 = vsub.f32 %v1132, %v1133
      %v1135 = vand.u32 %v1134, 4294901760
      %1136 = vmatprep.subr.mxu0 %v1135
      %v1137 = vand.u32 %v1019, 4294901760
      %v1138 = vsub.f32 %v1019, %v1137
      %v1139 = vand.u32 %v1138, 4294901760
      %v1140 = vsub.f32 %v1138, %v1139
      %v1141 = vand.u32 %v1140, 4294901760
      %1142 = vmatpush1.msra.mxu0 %v1141
      %1143 = vmatprep.subr.mxu0 0.0
      %1144 = vmatpush1.msra.mxu0 0.0
      %1145 = vmatprep.subr.mxu0 0.0
      %1146 = vmatpush1.msra.mxu0 0.0
      %1147 = vmatprep.subr.mxu0 0.0
      %1148 = vmatpush1.msra.mxu0 0.0
      %1149 = vmatprep.subr.mxu0 0.0
      %1150 = vmatpush1.msra.mxu0 0.0
      %1151 = vmatprep.subr.mxu0 0.0
      %1152 = vmatpush1.msra.mxu0 0.0
      %1153 = vmatprep.subr.mxu0 0.0
      %1154 = vmatpush1.msra.mxu0 0.0
      %1155 = vmatprep.subr.mxu0 0.0
      %1156 = vmatpush1.msra.mxu0 0.0
      %1157 = vmatprep.subr.mxu0 0.0
      %1158 = vmatpush1.msra.mxu0 0.0
      %1159 = vmatprep.subr.mxu0 0.0
      %1160 = vmatpush1.msra.mxu0 0.0
      %1161 = vmatprep.subr.mxu0 0.0
      %1162 = vmatpush1.msra.mxu0 0.0
      %1163 = vmatprep.subr.mxu0 0.0
      %1164 = vmatpush1.msra.mxu0 0.0
      %1165 = vmatprep.subr.mxu0 0.0
      %1166 = vmatpush1.msra.mxu0 0.0
      %1167 = vmatprep.subr.mxu0 0.0
      %1168 = vmatpush1.msra.mxu0 0.0
      %1169 = vmatprep.subr.mxu0 0.0
      %1170 = vmatpush1.msra.mxu0 0.0
      %1171 = vmatprep.subr.mxu0 0.0
      %1172 = vmatpush1.msra.mxu0 0.0
      %1173 = vmatprep.subr.mxu0 0.0
      %1174 = vmatpush1.msra.mxu0 0.0
      %1175 = vmatprep.subr.mxu0 0.0
      %1176 = vmatpush1.msra.mxu0 0.0
      %1177 = vmatprep.subr.mxu0 0.0
      %1178 = vmatpush1.msra.mxu0 0.0
      %1179 = vmatprep.subr.mxu0 0.0
      %1180 = vmatpush1.msra.mxu0 0.0
      %1181 = vmatprep.subr.mxu0 0.0
      %1182 = vmatpush1.msra.mxu0 0.0
      %1183 = vmatprep.subr.mxu0 0.0
      %1184 = vmatpush1.msra.mxu0 0.0
      %1185 = vmatprep.subr.mxu0 0.0
      %1186 = vmatpush1.msra.mxu0 0.0
      %1187 = vmatprep.subr.mxu0 0.0
      %1188 = vmatpush1.msra.mxu0 0.0
      %1189 = vmatprep.subr.mxu0 0.0
      %1190 = vmatpush1.msra.mxu0 0.0
      %1191 = vmatprep.subr.mxu0 0.0
      %1192 = vmatpush1.msra.mxu0 0.0
      %1193 = vmatprep.subr.mxu0 0.0
      %1194 = vmatpush1.msra.mxu0 0.0
      %1195 = vmatprep.subr.mxu0 0.0
      %1196 = vmatpush1.msra.mxu0 0.0
      %1197 = vmatprep.subr.mxu0 0.0
      %1198 = vmatpush1.msra.mxu0 0.0
      %1199 = vmatprep.subr.mxu0 0.0
      %1200 = vmatpush1.msra.mxu0 0.0
      %1201 = vmatprep.subr.mxu0 0.0
      %1202 = vmatpush1.msra.mxu0 0.0
      %1203 = vmatprep.subr.mxu0 0.0
      %1204 = vmatpush1.msra.mxu0 0.0
      %1205 = vmatprep.mubr.f32.mxu0 0.0
      %v1206 = vand.u32 %v1037, 4294901760
      %1207 = vmatmul.mubr.f32.gmra.mrb[0].mxu0 %v1206
      %v1208 = vpop.f32.mrb[0].mxu0
      %v1209 = vadd.f32 %v1116, %v1208
      %v1210 = vpop.f32.mrb[0].mxu0
      %v1211 = vadd.f32 %v1118, %v1210
      %1212 = vmatprep.mubr.f32.mxu0 0.0
      %v1213 = vand.u32 %v1040, 4294901760
      %1214 = vmatmul.mubr.f32.gmra.mrb[0].mxu0 %v1213
      %v1215 = vpop.f32.mrb[0].mxu0
      %v1216 = vadd.f32 %v1127, %v1215
      %v1217 = vpop.f32.mrb[0].mxu0
      %v1218 = vadd.f32 %v1129, %v1217
      %1219 = vdwg.mxu0
      %v1220 = vand.u32 %v1020, 4294901760
      %v1221 = vsub.f32 %v1020, %v1220
      %1222 = vmatprep.subr.mxu0 %v1221
      %v1223 = vand.u32 %v1019, 4294901760
      %v1224 = vsub.f32 %v1019, %v1223
      %1225 = vmatpush1.msra.mxu0 %v1224
      %1226 = vmatprep.subr.mxu0 0.0
      %1227 = vmatpush1.msra.mxu0 0.0
      %1228 = vmatprep.subr.mxu0 0.0
      %1229 = vmatpush1.msra.mxu0 0.0
      %1230 = vmatprep.subr.mxu0 0.0
      %1231 = vmatpush1.msra.mxu0 0.0
      %1232 = vmatprep.subr.mxu0 0.0
      %1233 = vmatpush1.msra.mxu0 0.0
      %1234 = vmatprep.subr.mxu0 0.0
      %1235 = vmatpush1.msra.mxu0 0.0
      %1236 = vmatprep.subr.mxu0 0.0
      %1237 = vmatpush1.msra.mxu0 0.0
      %1238 = vmatprep.subr.mxu0 0.0
      %1239 = vmatpush1.msra.mxu0 0.0
      %1240 = vmatprep.subr.mxu0 0.0
      %1241 = vmatpush1.msra.mxu0 0.0
      %1242 = vmatprep.subr.mxu0 0.0
      %1243 = vmatpush1.msra.mxu0 0.0
      %1244 = vmatprep.subr.mxu0 0.0
      %1245 = vmatpush1.msra.mxu0 0.0
      %1246 = vmatprep.subr.mxu0 0.0
      %1247 = vmatpush1.msra.mxu0 0.0
      %1248 = vmatprep.subr.mxu0 0.0
      %1249 = vmatpush1.msra.mxu0 0.0
      %1250 = vmatprep.subr.mxu0 0.0
      %1251 = vmatpush1.msra.mxu0 0.0
      %1252 = vmatprep.subr.mxu0 0.0
      %1253 = vmatpush1.msra.mxu0 0.0
      %1254 = vmatprep.subr.mxu0 0.0
      %1255 = vmatpush1.msra.mxu0 0.0
      %1256 = vmatprep.subr.mxu0 0.0
      %1257 = vmatpush1.msra.mxu0 0.0
      %1258 = vmatprep.subr.mxu0 0.0
      %1259 = vmatpush1.msra.mxu0 0.0
      %1260 = vmatprep.subr.mxu0 0.0
      %1261 = vmatpush1.msra.mxu0 0.0
      %1262 = vmatprep.subr.mxu0 0.0
      %1263 = vmatpush1.msra.mxu0 0.0
      %1264 = vmatprep.subr.mxu0 0.0
      %1265 = vmatpush1.msra.mxu0 0.0
      %1266 = vmatprep.subr.mxu0 0.0
      %1267 = vmatpush1.msra.mxu0 0.0
      %1268 = vmatprep.subr.mxu0 0.0
      %1269 = vmatpush1.msra.mxu0 0.0
      %1270 = vmatprep.subr.mxu0 0.0
      %1271 = vmatpush1.msra.mxu0 0.0
      %1272 = vmatprep.subr.mxu0 0.0
      %1273 = vmatpush1.msra.mxu0 0.0
      %1274 = vmatprep.subr.mxu0 0.0
      %1275 = vmatpush1.msra.mxu0 0.0
      %1276 = vmatprep.subr.mxu0 0.0
      %1277 = vmatpush1.msra.mxu0 0.0
      %1278 = vmatprep.subr.mxu0 0.0
      %1279 = vmatpush1.msra.mxu0 0.0
      %1280 = vmatprep.subr.mxu0 0.0
      %1281 = vmatpush1.msra.mxu0 0.0
      %1282 = vmatprep.subr.mxu0 0.0
      %1283 = vmatpush1.msra.mxu0 0.0
      %1284 = vmatprep.subr.mxu0 0.0
      %1285 = vmatpush1.msra.mxu0 0.0
      %1286 = vmatprep.subr.mxu0 0.0
      %1287 = vmatpush1.msra.mxu0 0.0
      %1288 = vmatprep.mubr.f32.mxu0 0.0
      %v1289 = vand.u32 %v1037, 4294901760
      %v1290 = vsub.f32 %v1037, %v1289
      %1291 = vmatmul.mubr.f32.gmra.mrb[0].mxu0 %v1290
      %v1292 = vpop.f32.mrb[0].mxu0
      %v1293 = vadd.f32 %v1209, %v1292
      %v1294 = vpop.f32.mrb[0].mxu0
      %v1295 = vadd.f32 %v1211, %v1294
      %1296 = vmatprep.mubr.f32.mxu0 0.0
      %v1297 = vand.u32 %v1040, 4294901760
      %v1298 = vsub.f32 %v1040, %v1297
      %1299 = vmatmul.mubr.f32.gmra.mrb[0].mxu0 %v1298
      %v1300 = vpop.f32.mrb[0].mxu0
      %v1301 = vadd.f32 %v1216, %v1300
      %v1302 = vpop.f32.mrb[0].mxu0
      %v1303 = vadd.f32 %v1218, %v1302
      %1304 = vdwg.mxu0
      %v1305 = vand.u32 %v1020, 4294901760
      %1306 = vmatprep.subr.mxu0 %v1305
      %v1307 = vand.u32 %v1019, 4294901760
      %1308 = vmatpush1.msra.mxu0 %v1307
      %1309 = vmatprep.subr.mxu0 0.0
      %1310 = vmatpush1.msra.mxu0 0.0
      %1311 = vmatprep.subr.mxu0 0.0
      %1312 = vmatpush1.msra.mxu0 0.0
      %1313 = vmatprep.subr.mxu0 0.0
      %1314 = vmatpush1.msra.mxu0 0.0
      %1315 = vmatprep.subr.mxu0 0.0
      %1316 = vmatpush1.msra.mxu0 0.0
      %1317 = vmatprep.subr.mxu0 0.0
      %1318 = vmatpush1.msra.mxu0 0.0
      %1319 = vmatprep.subr.mxu0 0.0
      %1320 = vmatpush1.msra.mxu0 0.0
      %1321 = vmatprep.subr.mxu0 0.0
      %1322 = vmatpush1.msra.mxu0 0.0
      %1323 = vmatprep.subr.mxu0 0.0
      %1324 = vmatpush1.msra.mxu0 0.0
      %1325 = vmatprep.subr.mxu0 0.0
      %1326 = vmatpush1.msra.mxu0 0.0
      %1327 = vmatprep.subr.mxu0 0.0
      %1328 = vmatpush1.msra.mxu0 0.0
      %1329 = vmatprep.subr.mxu0 0.0
      %1330 = vmatpush1.msra.mxu0 0.0
      %1331 = vmatprep.subr.mxu0 0.0
      %1332 = vmatpush1.msra.mxu0 0.0
      %1333 = vmatprep.subr.mxu0 0.0
      %1334 = vmatpush1.msra.mxu0 0.0
      %1335 = vmatprep.subr.mxu0 0.0
      %1336 = vmatpush1.msra.mxu0 0.0
      %1337 = vmatprep.subr.mxu0 0.0
      %1338 = vmatpush1.msra.mxu0 0.0
      %1339 = vmatprep.subr.mxu0 0.0
      %1340 = vmatpush1.msra.mxu0 0.0
      %1341 = vmatprep.subr.mxu0 0.0
      %1342 = vmatpush1.msra.mxu0 0.0
      %1343 = vmatprep.subr.mxu0 0.0
      %1344 = vmatpush1.msra.mxu0 0.0
      %1345 = vmatprep.subr.mxu0 0.0
      %1346 = vmatpush1.msra.mxu0 0.0
      %1347 = vmatprep.subr.mxu0 0.0
      %1348 = vmatpush1.msra.mxu0 0.0
      %1349 = vmatprep.subr.mxu0 0.0
      %1350 = vmatpush1.msra.mxu0 0.0
      %1351 = vmatprep.subr.mxu0 0.0
      %1352 = vmatpush1.msra.mxu0 0.0
      %1353 = vmatprep.subr.mxu0 0.0
      %1354 = vmatpush1.msra.mxu0 0.0
      %1355 = vmatprep.subr.mxu0 0.0
      %1356 = vmatpush1.msra.mxu0 0.0
      %1357 = vmatprep.subr.mxu0 0.0
      %1358 = vmatpush1.msra.mxu0 0.0
      %1359 = vmatprep.subr.mxu0 0.0
      %1360 = vmatpush1.msra.mxu0 0.0
      %1361 = vmatprep.subr.mxu0 0.0
      %1362 = vmatpush1.msra.mxu0 0.0
      %1363 = vmatprep.subr.mxu0 0.0
      %1364 = vmatpush1.msra.mxu0 0.0
      %1365 = vmatprep.subr.mxu0 0.0
      %1366 = vmatpush1.msra.mxu0 0.0
      %1367 = vmatprep.subr.mxu0 0.0
      %1368 = vmatpush1.msra.mxu0 0.0
      %1369 = vmatprep.subr.mxu0 0.0
      %1370 = vmatpush1.msra.mxu0 0.0
      %1371 = vmatprep.mubr.f32.mxu0 0.0
      %v1372 = vand.u32 %v1037, 4294901760
      %v1373 = vsub.f32 %v1037, %v1372
      %v1374 = vand.u32 %v1373, 4294901760
      %1375 = vmatmul.mubr.f32.gmra.mrb[0].mxu0 %v1374
      %v1376 = vpop.f32.mrb[0].mxu0
      %v1377 = vadd.f32 %v1293, %v1376
      %v1378 = vpop.f32.mrb[0].mxu0
      %v1379 = vadd.f32 %v1295, %v1378
      %1380 = vmatprep.mubr.f32.mxu0 0.0
      %v1381 = vand.u32 %v1040, 4294901760
      %v1382 = vsub.f32 %v1040, %v1381
      %v1383 = vand.u32 %v1382, 4294901760
      %1384 = vmatmul.mubr.f32.gmra.mrb[0].mxu0 %v1383
      %v1385 = vpop.f32.mrb[0].mxu0
      %v1386 = vadd.f32 %v1301, %v1385
      %v1387 = vpop.f32.mrb[0].mxu0
      %v1388 = vadd.f32 %v1303, %v1387
      %1389 = vdwg.mxu0
      %v1390 = vand.u32 %v1020, 4294901760
      %v1391 = vsub.f32 %v1020, %v1390
      %v1392 = vand.u32 %v1391, 4294901760
      %1393 = vmatprep.subr.mxu0 %v1392
      %v1394 = vand.u32 %v1019, 4294901760
      %v1395 = vsub.f32 %v1019, %v1394
      %v1396 = vand.u32 %v1395, 4294901760
      %1397 = vmatpush1.msra.mxu0 %v1396
      %1398 = vmatprep.subr.mxu0 0.0
      %1399 = vmatpush1.msra.mxu0 0.0
      %1400 = vmatprep.subr.mxu0 0.0
      %1401 = vmatpush1.msra.mxu0 0.0
      %1402 = vmatprep.subr.mxu0 0.0
      %1403 = vmatpush1.msra.mxu0 0.0
      %1404 = vmatprep.subr.mxu0 0.0
      %1405 = vmatpush1.msra.mxu0 0.0
      %1406 = vmatprep.subr.mxu0 0.0
      %1407 = vmatpush1.msra.mxu0 0.0
      %1408 = vmatprep.subr.mxu0 0.0
      %1409 = vmatpush1.msra.mxu0 0.0
      %1410 = vmatprep.subr.mxu0 0.0
      %1411 = vmatpush1.msra.mxu0 0.0
      %1412 = vmatprep.subr.mxu0 0.0
      %1413 = vmatpush1.msra.mxu0 0.0
      %1414 = vmatprep.subr.mxu0 0.0
      %1415 = vmatpush1.msra.mxu0 0.0
      %1416 = vmatprep.subr.mxu0 0.0
      %1417 = vmatpush1.msra.mxu0 0.0
      %1418 = vmatprep.subr.mxu0 0.0
      %1419 = vmatpush1.msra.mxu0 0.0
      %1420 = vmatprep.subr.mxu0 0.0
      %1421 = vmatpush1.msra.mxu0 0.0
      %1422 = vmatprep.subr.mxu0 0.0
      %1423 = vmatpush1.msra.mxu0 0.0
      %1424 = vmatprep.subr.mxu0 0.0
      %1425 = vmatpush1.msra.mxu0 0.0
      %1426 = vmatprep.subr.mxu0 0.0
      %1427 = vmatpush1.msra.mxu0 0.0
      %1428 = vmatprep.subr.mxu0 0.0
      %1429 = vmatpush1.msra.mxu0 0.0
      %1430 = vmatprep.subr.mxu0 0.0
      %1431 = vmatpush1.msra.mxu0 0.0
      %1432 = vmatprep.subr.mxu0 0.0
      %1433 = vmatpush1.msra.mxu0 0.0
      %1434 = vmatprep.subr.mxu0 0.0
      %1435 = vmatpush1.msra.mxu0 0.0
      %1436 = vmatprep.subr.mxu0 0.0
      %1437 = vmatpush1.msra.mxu0 0.0
      %1438 = vmatprep.subr.mxu0 0.0
      %1439 = vmatpush1.msra.mxu0 0.0
      %1440 = vmatprep.subr.mxu0 0.0
      %1441 = vmatpush1.msra.mxu0 0.0
      %1442 = vmatprep.subr.mxu0 0.0
      %1443 = vmatpush1.msra.mxu0 0.0
      %1444 = vmatprep.subr.mxu0 0.0
      %1445 = vmatpush1.msra.mxu0 0.0
      %1446 = vmatprep.subr.mxu0 0.0
      %1447 = vmatpush1.msra.mxu0 0.0
      %1448 = vmatprep.subr.mxu0 0.0
      %1449 = vmatpush1.msra.mxu0 0.0
      %1450 = vmatprep.subr.mxu0 0.0
      %1451 = vmatpush1.msra.mxu0 0.0
      %1452 = vmatprep.subr.mxu0 0.0
      %1453 = vmatpush1.msra.mxu0 0.0
      %1454 = vmatprep.subr.mxu0 0.0
      %1455 = vmatpush1.msra.mxu0 0.0
      %1456 = vmatprep.subr.mxu0 0.0
      %1457 = vmatpush1.msra.mxu0 0.0
      %1458 = vmatprep.subr.mxu0 0.0
      %1459 = vmatpush1.msra.mxu0 0.0
      %1460 = vmatprep.mubr.f32.mxu0 0.0
      %v1461 = vand.u32 %v1037, 4294901760
      %1462 = vmatmul.mubr.f32.gmra.mrb[0].mxu0 %v1461
      %v1463 = vpop.f32.mrb[0].mxu0
      %v1464 = vadd.f32 %v1377, %v1463
      %v1465 = vpop.f32.mrb[0].mxu0
      %v1466 = vadd.f32 %v1379, %v1465
      %1467 = vmatprep.mubr.f32.mxu0 0.0
      %v1468 = vand.u32 %v1040, 4294901760
      %1469 = vmatmul.mubr.f32.gmra.mrb[0].mxu0 %v1468
      %v1470 = vpop.f32.mrb[0].mxu0
      %v1471 = vadd.f32 %v1386, %v1470
      %v1472 = vpop.f32.mrb[0].mxu0
      %v1473 = vadd.f32 %v1388, %v1472
      %1474 = vdwg.mxu0
      %v1475 = vand.u32 %v1020, 4294901760
      %1476 = vmatprep.subr.mxu0 %v1475
      %v1477 = vand.u32 %v1019, 4294901760
      %1478 = vmatpush1.msra.mxu0 %v1477
      %1479 = vmatprep.subr.mxu0 0.0
      %1480 = vmatpush1.msra.mxu0 0.0
      %1481 = vmatprep.subr.mxu0 0.0
      %1482 = vmatpush1.msra.mxu0 0.0
      %1483 = vmatprep.subr.mxu0 0.0
      %1484 = vmatpush1.msra.mxu0 0.0
      %1485 = vmatprep.subr.mxu0 0.0
      %1486 = vmatpush1.msra.mxu0 0.0
      %1487 = vmatprep.subr.mxu0 0.0
      %1488 = vmatpush1.msra.mxu0 0.0
      %1489 = vmatprep.subr.mxu0 0.0
      %1490 = vmatpush1.msra.mxu0 0.0
      %1491 = vmatprep.subr.mxu0 0.0
      %1492 = vmatpush1.msra.mxu0 0.0
      %1493 = vmatprep.subr.mxu0 0.0
      %1494 = vmatpush1.msra.mxu0 0.0
      %1495 = vmatprep.subr.mxu0 0.0
      %1496 = vmatpush1.msra.mxu0 0.0
      %1497 = vmatprep.subr.mxu0 0.0
      %1498 = vmatpush1.msra.mxu0 0.0
      %1499 = vmatprep.subr.mxu0 0.0
      %1500 = vmatpush1.msra.mxu0 0.0
      %1501 = vmatprep.subr.mxu0 0.0
      %1502 = vmatpush1.msra.mxu0 0.0
      %1503 = vmatprep.subr.mxu0 0.0
      %1504 = vmatpush1.msra.mxu0 0.0
      %1505 = vmatprep.subr.mxu0 0.0
      %1506 = vmatpush1.msra.mxu0 0.0
      %1507 = vmatprep.subr.mxu0 0.0
      %1508 = vmatpush1.msra.mxu0 0.0
      %1509 = vmatprep.subr.mxu0 0.0
      %1510 = vmatpush1.msra.mxu0 0.0
      %1511 = vmatprep.subr.mxu0 0.0
      %1512 = vmatpush1.msra.mxu0 0.0
      %1513 = vmatprep.subr.mxu0 0.0
      %1514 = vmatpush1.msra.mxu0 0.0
      %1515 = vmatprep.subr.mxu0 0.0
      %1516 = vmatpush1.msra.mxu0 0.0
      %1517 = vmatprep.subr.mxu0 0.0
      %1518 = vmatpush1.msra.mxu0 0.0
      %1519 = vmatprep.subr.mxu0 0.0
      %1520 = vmatpush1.msra.mxu0 0.0
      %1521 = vmatprep.subr.mxu0 0.0
      %1522 = vmatpush1.msra.mxu0 0.0
      %1523 = vmatprep.subr.mxu0 0.0
      %1524 = vmatpush1.msra.mxu0 0.0
      %1525 = vmatprep.subr.mxu0 0.0
      %1526 = vmatpush1.msra.mxu0 0.0
      %1527 = vmatprep.subr.mxu0 0.0
      %1528 = vmatpush1.msra.mxu0 0.0
      %1529 = vmatprep.subr.mxu0 0.0
      %1530 = vmatpush1.msra.mxu0 0.0
      %1531 = vmatprep.subr.mxu0 0.0
      %1532 = vmatpush1.msra.mxu0 0.0
      %1533 = vmatprep.subr.mxu0 0.0
      %1534 = vmatpush1.msra.mxu0 0.0
      %1535 = vmatprep.subr.mxu0 0.0
      %1536 = vmatpush1.msra.mxu0 0.0
      %1537 = vmatprep.subr.mxu0 0.0
      %1538 = vmatpush1.msra.mxu0 0.0
      %1539 = vmatprep.subr.mxu0 0.0
      %1540 = vmatpush1.msra.mxu0 0.0
      %1541 = vmatprep.mubr.f32.mxu0 0.0
      %v1542 = vand.u32 %v1037, 4294901760
      %1543 = vmatmul.mubr.f32.gmra.mrb[0].mxu0 %v1542
      %v1544 = vpop.f32.mrb[0].mxu0
      %v1545 = vadd.f32 %v1464, %v1544
      %v1546 = vpop.f32.mrb[0].mxu0
      %v1547 = vadd.f32 %v1466, %v1546
      %1548 = vmatprep.mubr.f32.mxu0 0.0
      %v1549 = vand.u32 %v1040, 4294901760
      %1550 = vmatmul.mubr.f32.gmra.mrb[0].mxu0 %v1549
      %v1551 = vpop.f32.mrb[0].mxu0
      %v1552 = vadd.f32 %v1471, %v1551
      %v1553 = vpop.f32.mrb[0].mxu0
      %v1554 = vadd.f32 %v1473, %v1553
      %1555 = vdwg.mxu0
      %v1556 = vsub.f32 0.0, %v1545
      %v1557 = vsub.f32 0.0, %v1547
      %v1558 = vsub.f32 0.0, %v1552
      %v1559 = vsub.f32 0.0, %v1554
      %v1560 = vmul.f32 %v1556, 1.442695
      %v1561 = vpow.pop %v1560
      %v1562 = vmul.f32 %v1557, 1.442695
      %v1563 = vpow.pop %v1562
      %v1564 = vmul.f32 %v1558, 1.442695
      %v1565 = vpow.pop %v1564
      %v1566 = vmul.f32 %v1559, 1.442695
      %v1567 = vpow.pop %v1566
      %v1568 = vadd.f32 %v1561, 1.0
      %v1569 = vadd.f32 %v1563, 1.0
      %v1570 = vadd.f32 %v1565, 1.0
      %v1571 = vadd.f32 %v1567, 1.0
      %v1572 = vrcp.pop %v1568
      %v1573 = vrcp.pop %v1569
      %v1574 = vrcp.pop %v1570
      %v1575 = vrcp.pop %v1571
      %v1576 = vmul.f32 %v1568, %v1572
      %v1577 = vmul.f32 %v1569, %v1573
      %v1578 = vmul.f32 %v1570, %v1574
      %v1579 = vmul.f32 %v1571, %v1575
      %v1580 = vsub.f32 2.0, %v1576
      %v1581 = vsub.f32 2.0, %v1577
      %v1582 = vsub.f32 2.0, %v1578
      %v1583 = vsub.f32 2.0, %v1579
      %v1584 = vmul.f32 %v1572, %v1580
      %v1585 = vmul.f32 %v1573, %v1581
      %v1586 = vmul.f32 %v1574, %v1582
      %v1587 = vmul.f32 %v1575, %v1583
      %v1588 = vmul.f32 %v1545, %v1584
      %v1589 = vmul.f32 %v1547, %v1585
      %v1590 = vmul.f32 %v1552, %v1586
      %v1591 = vmul.f32 %v1554, %v1587
      %1592 = vst [vmem:[%s224] sm:$0xff] %v1588
      %1593 = vst [vmem:[%s224 + $0x8] sm:$0xff] %v1589
      %1594 = vst [vmem:[%s224 + $0x10] sm:$0xff] %v1590
      %1595 = vst [vmem:[%s224 + $0x18] sm:$0xff] %v1591
      %p1596 = scmp.lt.s32.totalorder %s16, 1
      %s1597 = scalar_select %p1596, %s16, 1
      %s1598 = smul.addr %s1597, 4
      %s1599 = smul.addr %s1598, 8
      %s1600 = scalar_lea.vmem %s5, %s1599
      // Predicated region
      $region41: #{test_model_forward.1} parent=39 // pred_check
        %p1601 = pneg %p144
      $region42: #{test_model_forward.1} parent=39 // pred_check_branch
        %1603 = sbr.rel (%p1601) target = $region44
      $region43: #{test_model_forward.1} parent=39 // pred_region
        _
      $region44: #{test_model_forward.1} parent=39 // pred_fallthru
        _
    $region40: #{test_model_forward.1} parent=5 // pred_fallthru
      _
    %p1604 = scmp.le.s32.totalorder 2, %s11
    // Predicated region
    $region45: #{test_model_forward.1} parent=5 // pred_check
      %p1605 = pneg %p1604
    $region46: #{test_model_forward.1} parent=5 // pred_check_branch
      %1607 = sbr.rel (%p1605) target = $region48
    $region47: #{test_model_forward.1} parent=5 // pred_region
      %s1608 = ssub.s32 %s11, 2
      // Predicated region
      $region49: #{test_model_forward.1} parent=47 // pred_check
        %p1609 = pneg %p150
      $region50: #{test_model_forward.1} parent=47 // pred_check_branch
        %1611 = sbr.rel (%p1609) target = $region52
      $region51: #{test_model_forward.1} parent=47 // pred_region
        %p1612 = scmp.lt.s32.totalorder %s17, 1
        %s1613 = scalar_select %p1612, %s17, 1
        %s1614 = smul.addr %s1613, 4
        %s1615 = smul.addr %s1614, 8
        %s1616 = scalar_lea.vmem %s5, %s1615
      $region52: #{test_model_forward.1} parent=47 // pred_fallthru
        _
    $region48: #{test_model_forward.1} parent=5 // pred_fallthru
      _
  $region6: #{test_model_forward.1} parent=0 // loop_footer
    %s15 = sadd.s32 1, %s11
  $region7: #{test_model_forward.1} parent=0 // loop_footer_branch
    %10 = sbr.rel target = $region3
  $region8: #{test_model_forward.1} parent=0 // loop_exit
    _

</llo_original>
